<compile_context>
chip_gen: v7x
topology: tpu7x:2x2x1
jax: 0.10.0
libtpu: 0.0.40
codegen_flags: <defaults>
</compile_context>

<pallas_src>
import math
from functools import partial

import jax
import jax.numpy as jnp
from jax import lax
from jax.experimental import pallas as pl
from jax.experimental.pallas import tpu as pltpu

STATE_FEAT = 3 * 32 * 32   # 3072 = 24 * 128 (lane aligned)
ACT_PAD = 128              # tiny action feature dim padded to one lane width


def _round_up(x, m):
    return ((x + m - 1) // m) * m


def _choose_m_tile(m, cap=256):
    """Pick an M tile (multiple of 16 sublanes) that divides the padded M."""
    mp = _round_up(max(m, 16), 16)
    if mp <= cap:
        return mp, mp
    return cap, _round_up(mp, cap)


# --------------------------------------------------------------------------
# Kernel 1: hoisted input projection  xproj = X @ W_s + A @ W_a + b
# --------------------------------------------------------------------------
def _input_proj_kernel(x_ref, a_ref, ws_ref, wa_ref, b_ref, out_ref, acc_ref):
    k = pl.program_id(1)

    @pl.when(k == 0)
    def _():
        # action contribution + pre-summed biases seed the accumulator
        acc_ref[...] = (
            jnp.dot(a_ref[...], wa_ref[...], preferred_element_type=jnp.float32)
            + b_ref[...])

    acc_ref[...] += jnp.dot(x_ref[...], ws_ref[...],
                            preferred_element_type=jnp.float32)

    @pl.when(k == pl.num_programs(1) - 1)
    def _():
        out_ref[...] = acc_ref[...]


# --------------------------------------------------------------------------
# Kernel 2: tiny sequential LSTM recurrence, one grid-less call, fori_loop.
# --------------------------------------------------------------------------
def _lstm_recurrence_kernel(xproj_ref, h0_ref, c0_ref, whh_ref,
                            hall_ref, hn_ref, cn_ref,
                            *, hidden_size, seq_len):
    H = hidden_size
    w_hh = whh_ref[...]                    # [H, 4H] bf16, hoisted / loop-invariant

    def step(t, carry):
        h, c = carry
        gates = xproj_ref[t] + jnp.dot(h.astype(w_hh.dtype), w_hh,
                                       preferred_element_type=jnp.float32)
        # Full-vreg transcendentals (2 EUP ops) then cheap static gate slices.
        sg = jax.nn.sigmoid(gates)
        th = jnp.tanh(gates)
        i_g = sg[:, 0 * H:1 * H]
        f_g = sg[:, 1 * H:2 * H]
        g_g = th[:, 2 * H:3 * H]
        o_g = sg[:, 3 * H:4 * H]
        c_new = f_g * c + i_g * g_g
        h_new = o_g * jnp.tanh(c_new)
        hall_ref[t] = h_new                # h history for the deferred out-GEMM
        return h_new, c_new

    h, c = lax.fori_loop(0, seq_len, step, (h0_ref[...], c0_ref[...]),
                         unroll=(seq_len <= 8))
    hn_ref[...] = h
    cn_ref[...] = c


# --------------------------------------------------------------------------
# Kernel 3: deferred output projection  preds = H_all @ W_out + b_out
# --------------------------------------------------------------------------
def _output_proj_kernel(h_ref, w_ref, b_ref, out_ref):
    out_ref[...] = (jnp.dot(h_ref[...].astype(w_ref.dtype), w_ref[...],
                            preferred_element_type=jnp.float32)
                    + b_ref[...])


# --------------------------------------------------------------------------
# Parameters
# --------------------------------------------------------------------------
def init_worldmodel_params(key, action_size, hidden_size, output_size,
                           state_feat=STATE_FEAT, dtype=jnp.float32):
    """PyTorch-style uniform(-1/sqrt(H), 1/sqrt(H)) init (logical shapes)."""
    in_feat = state_feat + action_size
    k = 1.0 / math.sqrt(hidden_size)
    ks = jax.random.split(key, 6)
    return {
        # stored transposed relative to PyTorch so the kernels do x @ W
        "w_ih": jax.random.uniform(ks[0], (in_feat, 4 * hidden_size), dtype, -k, k),
        "w_hh": jax.random.uniform(ks[1], (hidden_size, 4 * hidden_size), dtype, -k, k),
        "b_ih": jax.random.uniform(ks[2], (1, 4 * hidden_size), dtype, -k, k),
        "b_hh": jax.random.uniform(ks[3], (1, 4 * hidden_size), dtype, -k, k),
        "w_out": jax.random.uniform(ks[4], (hidden_size, output_size), dtype, -k, k),
        "b_out": jax.random.uniform(ks[5], (1, output_size), dtype, -k, k),
    }


def prepare_params(params, state_feat=STATE_FEAT):
    """One-time packing (call OUTSIDE jit): split w_ih into state/action parts,
    pad the tiny action block to one lane width, pre-sum the two biases, and
    cast the large weights to bf16 (f32 MXU accumulation happens in-kernel)."""
    w_ih = params["w_ih"]
    act = w_ih.shape[0] - state_feat
    w_a = jnp.pad(w_ih[state_feat:].astype(jnp.float32),
                  ((0, ACT_PAD - act), (0, 0)))
    return {
        "w_s": w_ih[:state_feat].astype(jnp.bfloat16),        # [3072, 4H] bf16
        "w_a": w_a,                                            # [128, 4H]  f32
        "b": (params["b_ih"] + params["b_hh"]).astype(jnp.float32),
        "w_hh": params["w_hh"].astype(jnp.bfloat16),
        "w_out": params["w_out"].astype(jnp.bfloat16),
        "b_out": params["b_out"].astype(jnp.float32),
    }


# --------------------------------------------------------------------------
# Multi-step rollout: 3 Pallas calls (batched in-GEMM, recurrence, out-GEMM).
# --------------------------------------------------------------------------
@jax.jit
def worldmodel_forward_seq(prepped, states, actions, hidden=None):
    """states: [T, B, 3, 32, 32], actions: [T, B, A].
    Returns preds [T, B, output_size] and final hidden (h, c) each [1, B, H]."""
    T, B = states.shape[0], states.shape[1]
    SF = prepped["w_s"].shape[0]
    H = prepped["w_hh"].shape[0]
    G = 4 * H
    OUT = prepped["w_out"].shape[1]
    A = actions.shape[-1]
    Bp = _round_up(max(B, 8), 8)
    KT = 512 if SF % 512 == 0 else SF

    # ---- Phase 1: T*B-batched input projection (MXU sees M = T*B) --------
    mt_in, Mx = _choose_m_tile(T * B)
    x2d = jnp.pad(states.reshape(T * B, SF).astype(jnp.bfloat16),
                  ((0, Mx - T * B), (0, 0)))
    a2d = jnp.pad(actions.reshape(T * B, A).astype(jnp.float32),
                  ((0, Mx - T * B), (0, ACT_PAD - A)))

    xproj = pl.pallas_call(
        _input_proj_kernel,
        grid=(Mx // mt_in, SF // KT),
        out_shape=jax.ShapeDtypeStruct((Mx, G), jnp.float32),
        in_specs=[
            pl.BlockSpec((mt_in, KT), lambda i, k: (i, k)),       # states (bf16)
            pl.BlockSpec((mt_in, ACT_PAD), lambda i, k: (i, 0)),  # actions
            pl.BlockSpec((KT, G), lambda i, k: (k, 0)),           # w_s
            pl.BlockSpec((ACT_PAD, G), lambda i, k: (0, 0)),      # w_a
            pl.BlockSpec((1, G), lambda i, k: (0, 0)),            # b_ih + b_hh
        ],
        out_specs=pl.BlockSpec((mt_in, G), lambda i, k: (i, 0)),
        scratch_shapes=[pltpu.VMEM((mt_in, G), jnp.float32)],
        compiler_params=pltpu.CompilerParams(
            dimension_semantics=("parallel", "arbitrary")),
        cost_estimate=pl.CostEstimate(
            flops=2 * Mx * (SF + ACT_PAD) * G,
            transcendentals=0,
            bytes_accessed=Mx * SF * 2 + SF * G * 2 + Mx * G * 4),
    )(x2d, a2d, prepped["w_s"], prepped["w_a"], prepped["b"])

    # Re-layout the (small) projected tensor to [T, Bp, 4H]; 4H wide => cheap.
    xproj_t = jnp.pad(xproj[:T * B].reshape(T, B, G),
                      ((0, 0), (0, Bp - B), (0, 0)))

    if hidden is None:
        h0 = jnp.zeros((Bp, H), jnp.float32)
        c0 = jnp.zeros((Bp, H), jnp.float32)
    else:
        h0 = jnp.pad(hidden[0].reshape(B, H).astype(jnp.float32),
                     ((0, Bp - B), (0, 0)))
        c0 = jnp.pad(hidden[1].reshape(B, H).astype(jnp.float32),
                     ((0, Bp - B), (0, 0)))

    # ---- Phase 2: sequential recurrence, fori_loop inside one kernel ------
    h_all, h_n, c_n = pl.pallas_call(
        partial(_lstm_recurrence_kernel, hidden_size=H, seq_len=T),
        out_shape=(
            jax.ShapeDtypeStruct((T, Bp, H), jnp.float32),   # h history
            jax.ShapeDtypeStruct((Bp, H), jnp.float32),      # h_T
            jax.ShapeDtypeStruct((Bp, H), jnp.float32),      # c_T
        ),
        cost_estimate=pl.CostEstimate(
            flops=2 * T * Bp * H * G + 12 * T * Bp * G,
            transcendentals=3 * T * Bp * G,
            bytes_accessed=T * Bp * G * 4 + T * Bp * H * 4 + H * G * 2),
    )(xproj_t, h0, c0, prepped["w_hh"])

    # ---- Phase 3: T*Bp-batched output projection --------------------------
    mt_out, Mo = _choose_m_tile(T * Bp)
    h2d = jnp.pad(h_all.reshape(T * Bp, H), ((0, Mo - T * Bp), (0, 0)))
    preds_p = pl.pallas_call(
        _output_proj_kernel,
        grid=(Mo // mt_out,),
        out_shape=jax.ShapeDtypeStruct((Mo, OUT), jnp.float32),
        in_specs=[
            pl.BlockSpec((mt_out, H), lambda i: (i, 0)),
            pl.BlockSpec((H, OUT), lambda i: (0, 0)),
            pl.BlockSpec((1, OUT), lambda i: (0, 0)),
        ],
        out_specs=pl.BlockSpec((mt_out, OUT), lambda i: (i, 0)),
        compiler_params=pltpu.CompilerParams(
            dimension_semantics=("parallel",)),
        cost_estimate=pl.CostEstimate(
            flops=2 * Mo * H * OUT,
            transcendentals=0,
            bytes_accessed=Mo * H * 4 + H * OUT * 2 + Mo * OUT * 4),
    )(h2d, prepped["w_out"], prepped["b_out"])

    preds = preds_p[:T * Bp].reshape(T, Bp, OUT)[:, :B, :]
    return preds, (h_n[:B][None], c_n[:B][None])


def worldmodel_forward(prepped, state, action, hidden=None):
    """Single-step forward matching the PyTorch WorldModel.forward signature.

    state: [B, 3, 32, 32], action: [B, A], hidden: ((1,B,H),(1,B,H)) or None.
    Returns next_state_pred [B, output_size] and the updated hidden tuple.
    """
    preds, hid = worldmodel_forward_seq(prepped, state[None], action[None], hidden)
    return preds[0], hid


# --------------------------------------------------------------------------
# Pure-JAX reference (mirrors the kernel's bf16-weight / f32-accumulate math).
# --------------------------------------------------------------------------
def _reference_seq(params, states, actions, hidden):
    T, B = states.shape[0], states.shape[1]
    SF = STATE_FEAT
    H = params["w_hh"].shape[0]
    w_s = params["w_ih"][:SF].astype(jnp.bfloat16)
    w_a = params["w_ih"][SF:].astype(jnp.float32)
    w_hh = params["w_hh"].astype(jnp.bfloat16)
    w_out = params["w_out"].astype(jnp.bfloat16)
    b = (params["b_ih"] + params["b_hh"]).astype(jnp.float32)
    b_out = params["b_out"].astype(jnp.float32)
    h = hidden[0].reshape(B, H).astype(jnp.float32)
    c = hidden[1].reshape(B, H).astype(jnp.float32)
    preds = []
    for t in range(T):
        xs = states[t].reshape(B, -1).astype(jnp.bfloat16)
        gates = (jnp.dot(xs, w_s, preferred_element_type=jnp.float32)
                 + jnp.dot(actions[t].astype(jnp.float32), w_a,
                           preferred_element_type=jnp.float32)
                 + b
                 + jnp.dot(h.astype(jnp.bfloat16), w_hh,
                           preferred_element_type=jnp.float32))
        i = jax.nn.sigmoid(gates[:, :H])
        f = jax.nn.sigmoid(gates[:, H:2 * H])
        g = jnp.tanh(gates[:, 2 * H:3 * H])
        o = jax.nn.sigmoid(gates[:, 3 * H:])
        c = f * c + i * g
        h = o * jnp.tanh(c)
        preds.append(jnp.dot(h.astype(jnp.bfloat16), w_out,
                             preferred_element_type=jnp.float32) + b_out)
    return jnp.stack(preds), (h, c)


# --------------------------------------------------------------------------
if __name__ == "__main__":
    B = 2
    T = 6
    action_size = 3
    hidden_size = 32
    output_size = STATE_FEAT  # 3072

    key = jax.random.PRNGKey(0)
    k_p, k_s, k_a, k_h, k_c = jax.random.split(key, 5)

    params = init_worldmodel_params(k_p, action_size, hidden_size, output_size)
    prepped = prepare_params(params)   # one-time: split/pad/bias-sum/bf16 cast

    states = jax.random.normal(k_s, (T, B, 3, 32, 32), jnp.float32)   # NCHW
    actions = jax.random.normal(k_a, (T, B, action_size), jnp.float32)
    h0 = jax.random.normal(k_h, (1, B, hidden_size), jnp.float32)
    c0 = jax.random.normal(k_c, (1, B, hidden_size), jnp.float32)

    # 1) single-step forward (PyTorch-equivalent API)
    pred1, (h1, c1) = worldmodel_forward(prepped, states[0], actions[0],
                                         hidden=(h0, c0))

    # 2) T-step rollout (hoisted GEMMs + in-kernel recurrence loop)
    preds, (hT, cT) = worldmodel_forward_seq(prepped, states, actions,
                                             hidden=(h0, c0))

    jax.block_until_ready((pred1, h1, c1, preds, hT, cT))

    # correctness checks against pure-JAX reference (same bf16-weight math)
    preds_ref, (h_ref_T, c_ref_T) = _reference_seq(params, states, actions, (h0, c0))
    preds_ref1, (h_ref_1, c_ref_1) = _reference_seq(params, states[:1], actions[:1],
                                                    (h0, c0))

    assert pred1.shape == (B, output_size)
    assert h1.shape == (1, B, hidden_size) and c1.shape == (1, B, hidden_size)
    assert preds.shape == (T, B, output_size)
    assert hT.shape == (1, B, hidden_size) and cT.shape == (1, B, hidden_size)

    tol = dict(atol=3e-3, rtol=3e-3)
    assert jnp.allclose(pred1, preds_ref1[0], **tol)
    assert jnp.allclose(h1[0], h_ref_1, **tol)
    assert jnp.allclose(c1[0], c_ref_1, **tol)
    assert jnp.allclose(preds, preds_ref, **tol)
    assert jnp.allclose(hT[0], h_ref_T, **tol)
    assert jnp.allclose(cT[0], c_ref_T, **tol)

    print("KERNEL_OK")
</pallas_src>

<mosaic_0001>
module attributes {stable_mosaic.version = 11 : i64} {
  func.func @_input_proj_kernel(%arg0: i32, %arg1: i32, %arg2: memref<16x512xbf16, #tpu.memory_space<vmem>>, %arg3: memref<16x128xf32, #tpu.memory_space<vmem>>, %arg4: memref<512x128xbf16, #tpu.memory_space<vmem>>, %arg5: memref<128x128xf32, #tpu.memory_space<vmem>>, %arg6: memref<1x128xf32, #tpu.memory_space<vmem>>, %arg7: memref<16x128xf32, #tpu.memory_space<vmem>>, %arg8: memref<16x128xf32, #tpu.memory_space<vmem>>) attributes {dimension_semantics = [#tpu.dimension_semantics<parallel>, #tpu.dimension_semantics<arbitrary>], iteration_bounds = array<i64: 1, 6>, scalar_prefetch = 0 : i64, scratch_operands = 1 : i64, tpu.core_type = #tpu.core_type<tc>, window_params = [{transform_indices = @transform_0, window_bounds = array<i64: 16, 512>}, {transform_indices = @transform_1, window_bounds = array<i64: 16, 128>}, {transform_indices = @transform_2, window_bounds = array<i64: 512, 128>}, {pipeline_mode = #tpu.pipeline_mode<synchronous>, transform_indices = @transform_3, window_bounds = array<i64: 128, 128>}, {pipeline_mode = #tpu.pipeline_mode<synchronous>, transform_indices = @transform_4, window_bounds = array<i64: 1, 128>}, {transform_indices = @transform_5, window_bounds = array<i64: 16, 128>}]} {
    %c0_i32 = arith.constant 0 : i32
    %0 = arith.cmpi eq, %arg1, %c0_i32 : i32
    %1 = arith.extui %0 : i1 to i32
    %c0_i32_0 = arith.constant 0 : i32
    %2 = arith.cmpi ne, %1, %c0_i32_0 : i32
    scf.if %2 {
      %c0_9 = arith.constant 0 : index
      %c0_10 = arith.constant 0 : index
      %12 = vector.load %arg3[%c0_9, %c0_10] : memref<16x128xf32, #tpu.memory_space<vmem>>, vector<16x128xf32>
      %c0_11 = arith.constant 0 : index
      %c0_12 = arith.constant 0 : index
      %13 = vector.load %arg5[%c0_11, %c0_12] : memref<128x128xf32, #tpu.memory_space<vmem>>, vector<128x128xf32>
      %cst_13 = arith.constant dense<0.000000e+00> : vector<16x128xf32>
      %14 = tpu.matmul %12, %13, %cst_13 {dimension_numbers = #tpu.dot_dimension_numbers<[1], [0], [0], [1], [0, 0, 1, 1], [], []>} : vector<16x128xf32>, vector<128x128xf32>, vector<16x128xf32> -> vector<16x128xf32>
      %c0_14 = arith.constant 0 : index
      %c0_15 = arith.constant 0 : index
      %15 = vector.load %arg6[%c0_14, %c0_15] : memref<1x128xf32, #tpu.memory_space<vmem>>, vector<1x128xf32>
      %16 = vector.broadcast %15 : vector<1x128xf32> to vector<16x128xf32>
      %17 = arith.addf %14, %16 : vector<16x128xf32>
      %c0_16 = arith.constant 0 : index
      %c0_17 = arith.constant 0 : index
      %18 = vector.load %arg8[%c0_16, %c0_17] : memref<16x128xf32, #tpu.memory_space<vmem>>, vector<16x128xf32>
      tpu.vector_store %arg8[%c0_16, %c0_17], %17 {strides = array<i32>} : memref<16x128xf32, #tpu.memory_space<vmem>>, vector<16x128xf32>,
    } else {
    }
    %c0 = arith.constant 0 : index
    %c0_1 = arith.constant 0 : index
    %3 = vector.load %arg8[%c0, %c0_1] : memref<16x128xf32, #tpu.memory_space<vmem>>, vector<16x128xf32>
    %c0_2 = arith.constant 0 : index
    %c0_3 = arith.constant 0 : index
    %4 = vector.load %arg2[%c0_2, %c0_3] : memref<16x512xbf16, #tpu.memory_space<vmem>>, vector<16x512xbf16>
    %c0_4 = arith.constant 0 : index
    %c0_5 = arith.constant 0 : index
    %5 = vector.load %arg4[%c0_4, %c0_5] : memref<512x128xbf16, #tpu.memory_space<vmem>>, vector<512x128xbf16>
    %cst = arith.constant dense<0.000000e+00> : vector<16x128xf32>
    %6 = tpu.matmul %4, %5, %cst {dimension_numbers = #tpu.dot_dimension_numbers<[1], [0], [0], [1], [0, 0, 1, 1], [], []>} : vector<16x512xbf16>, vector<512x128xbf16>, vector<16x128xf32> -> vector<16x128xf32>
    %7 = arith.addf %3, %6 : vector<16x128xf32>
    %c0_6 = arith.constant 0 : index
    %c0_7 = arith.constant 0 : index
    %8 = vector.load %arg8[%c0_6, %c0_7] : memref<16x128xf32, #tpu.memory_space<vmem>>, vector<16x128xf32>
    tpu.vector_store %arg8[%c0_6, %c0_7], %7 {strides = array<i32>} : memref<16x128xf32, #tpu.memory_space<vmem>>, vector<16x128xf32>,
    %c5_i32 = arith.constant 5 : i32
    %9 = arith.cmpi eq, %arg1, %c5_i32 : i32
    %10 = arith.extui %9 : i1 to i32
    %c0_i32_8 = arith.constant 0 : i32
    %11 = arith.cmpi ne, %10, %c0_i32_8 : i32
    scf.if %11 {
      %c0_9 = arith.constant 0 : index
      %c0_10 = arith.constant 0 : index
      %12 = vector.load %arg8[%c0_9, %c0_10] : memref<16x128xf32, #tpu.memory_space<vmem>>, vector<16x128xf32>
      %c0_11 = arith.constant 0 : index
      %c0_12 = arith.constant 0 : index
      %13 = vector.load %arg7[%c0_11, %c0_12] : memref<16x128xf32, #tpu.memory_space<vmem>>, vector<16x128xf32>
      tpu.vector_store %arg7[%c0_11, %c0_12], %12 {strides = array<i32>} : memref<16x128xf32, #tpu.memory_space<vmem>>, vector<16x128xf32>,
    } else {
    }
    return
  }
  func.func @transform_0(%arg0: i32, %arg1: i32) -> (i32, i32) {
    %c0_i32 = arith.constant 0 : i32
    return %arg0, %arg1 : i32, i32
  }
  func.func @transform_1(%arg0: i32, %arg1: i32) -> (i32, i32) {
    %c0_i32 = arith.constant 0 : i32
    %c0_i32_0 = arith.constant 0 : i32
    return %arg0, %c0_i32 : i32, i32
  }
  func.func @transform_2(%arg0: i32, %arg1: i32) -> (i32, i32) {
    %c0_i32 = arith.constant 0 : i32
    %c0_i32_0 = arith.constant 0 : i32
    return %arg1, %c0_i32 : i32, i32
  }
  func.func @transform_3(%arg0: i32, %arg1: i32) -> (i32, i32) {
    %c0_i32 = arith.constant 0 : i32
    %c0_i32_0 = arith.constant 0 : i32
    %c0_i32_1 = arith.constant 0 : i32
    return %c0_i32, %c0_i32_0 : i32, i32
  }
  func.func @transform_4(%arg0: i32, %arg1: i32) -> (i32, i32) {
    %c0_i32 = arith.constant 0 : i32
    %c0_i32_0 = arith.constant 0 : i32
    %c0_i32_1 = arith.constant 0 : i32
    return %c0_i32, %c0_i32_0 : i32, i32
  }
  func.func @transform_5(%arg0: i32, %arg1: i32) -> (i32, i32) {
    %c0_i32 = arith.constant 0 : i32
    %c0_i32_0 = arith.constant 0 : i32
    return %arg0, %c0_i32 : i32, i32
  }
}

module attributes {stable_mosaic.version = 11 : i64} {
  func.func @_lstm_recurrence_kernel(%arg0: memref<1x8x128xf32, #tpu.memory_space<vmem>>, %arg1: memref<8x32xf32, #tpu.memory_space<vmem>>, %arg2: memref<8x32xf32, #tpu.memory_space<vmem>>, %arg3: memref<32x128xbf16, #tpu.memory_space<vmem>>, %arg4: memref<1x8x32xf32, #tpu.memory_space<vmem>>, %arg5: memref<8x32xf32, #tpu.memory_space<vmem>>, %arg6: memref<8x32xf32, #tpu.memory_space<vmem>>) attributes {dimension_semantics = [], scalar_prefetch = 0 : i64, scratch_operands = 0 : i64, tpu.core_type = #tpu.core_type<tc>} {
    %c0 = arith.constant 0 : index
    %c0_0 = arith.constant 0 : index
    %0 = vector.load %arg3[%c0, %c0_0] : memref<32x128xbf16, #tpu.memory_space<vmem>>, vector<32x128xbf16>
    %c0_1 = arith.constant 0 : index
    %c0_2 = arith.constant 0 : index
    %1 = vector.load %arg1[%c0_1, %c0_2] : memref<8x32xf32, #tpu.memory_space<vmem>>, vector<8x32xf32>
    %c0_3 = arith.constant 0 : index
    %c0_4 = arith.constant 0 : index
    %2 = vector.load %arg2[%c0_3, %c0_4] : memref<8x32xf32, #tpu.memory_space<vmem>>, vector<8x32xf32>
    %c0_i32 = arith.constant 0 : i32
    %3 = arith.index_cast %c0_i32 : i32 to index
    %c0_5 = arith.constant 0 : index
    %c0_6 = arith.constant 0 : index
    %4 = vector.load %arg0[%3, %c0_5, %c0_6] : memref<1x8x128xf32, #tpu.memory_space<vmem>>, vector<1x8x128xf32>
    %5 = vector.shape_cast %4 : vector<1x8x128xf32> to vector<8x128xf32>
    %6 = arith.truncf %1 : vector<8x32xf32> to vector<8x32xbf16>
    %cst = arith.constant dense<0.000000e+00> : vector<8x128xf32>
    %7 = tpu.matmul %6, %0, %cst {dimension_numbers = #tpu.dot_dimension_numbers<[1], [0], [0], [1], [0, 0, 1, 1], [], []>} : vector<8x32xbf16>, vector<32x128xbf16>, vector<8x128xf32> -> vector<8x128xf32>
    %8 = arith.addf %5, %7 : vector<8x128xf32>
    %9 = arith.negf %8 : vector<8x128xf32>
    %10 = math.exp %9 : vector<8x128xf32>
    %cst_7 = arith.constant 1.000000e+00 : f32
    %11 = vector.broadcast %cst_7 : f32 to vector<8x128xf32>
    %12 = arith.addf %11, %10 : vector<8x128xf32>
    %13 = arith.divf %11, %12 : vector<8x128xf32>
    %14 = math.tanh %8 : vector<8x128xf32>
    %15 = vector.extract_strided_slice %13 {offsets = [0, 0], sizes = [8, 32], strides = [1, 1]} : vector<8x128xf32> to vector<8x32xf32>
    %16 = vector.extract_strided_slice %13 {offsets = [0, 32], sizes = [8, 32], strides = [1, 1]} : vector<8x128xf32> to vector<8x32xf32>
    %17 = vector.extract_strided_slice %14 {offsets = [0, 64], sizes = [8, 32], strides = [1, 1]} : vector<8x128xf32> to vector<8x32xf32>
    %18 = vector.extract_strided_slice %13 {offsets = [0, 96], sizes = [8, 32], strides = [1, 1]} : vector<8x128xf32> to vector<8x32xf32>
    %19 = arith.mulf %16, %2 : vector<8x32xf32>
    %20 = arith.mulf %15, %17 : vector<8x32xf32>
    %21 = arith.addf %19, %20 : vector<8x32xf32>
    %22 = math.tanh %21 : vector<8x32xf32>
    %23 = arith.mulf %18, %22 : vector<8x32xf32>
    %24 = arith.index_cast %c0_i32 : i32 to index
    %c0_8 = arith.constant 0 : index
    %c0_9 = arith.constant 0 : index
    %25 = vector.load %arg4[%24, %c0_8, %c0_9] : memref<1x8x32xf32, #tpu.memory_space<vmem>>, vector<1x8x32xf32>
    %26 = vector.shape_cast %25 : vector<1x8x32xf32> to vector<8x32xf32>
    %27 = vector.shape_cast %23 : vector<8x32xf32> to vector<1x8x32xf32>
    tpu.vector_store %arg4[%24, %c0_8, %c0_9], %27 {strides = array<i32>} : memref<1x8x32xf32, #tpu.memory_space<vmem>>, vector<1x8x32xf32>,
    %c1_i32 = arith.constant 1 : i32
    %c0_10 = arith.constant 0 : index
    %c0_11 = arith.constant 0 : index
    %28 = vector.load %arg5[%c0_10, %c0_11] : memref<8x32xf32, #tpu.memory_space<vmem>>, vector<8x32xf32>
    tpu.vector_store %arg5[%c0_10, %c0_11], %23 {strides = array<i32>} : memref<8x32xf32, #tpu.memory_space<vmem>>, vector<8x32xf32>,
    %c0_12 = arith.constant 0 : index
    %c0_13 = arith.constant 0 : index
    %29 = vector.load %arg6[%c0_12, %c0_13] : memref<8x32xf32, #tpu.memory_space<vmem>>, vector<8x32xf32>
    tpu.vector_store %arg6[%c0_12, %c0_13], %21 {strides = array<i32>} : memref<8x32xf32, #tpu.memory_space<vmem>>, vector<8x32xf32>,
    return
  }
}

module attributes {stable_mosaic.version = 11 : i64} {
  func.func @_output_proj_kernel(%arg0: i32, %arg1: memref<16x32xf32, #tpu.memory_space<vmem>>, %arg2: memref<32x3072xbf16, #tpu.memory_space<vmem>>, %arg3: memref<1x3072xf32, #tpu.memory_space<vmem>>, %arg4: memref<16x3072xf32, #tpu.memory_space<vmem>>) attributes {dimension_semantics = [#tpu.dimension_semantics<parallel>], iteration_bounds = array<i64: 1>, scalar_prefetch = 0 : i64, scratch_operands = 0 : i64, tpu.core_type = #tpu.core_type<tc>, window_params = [{transform_indices = @transform_0, window_bounds = array<i64: 16, 32>}, {pipeline_mode = #tpu.pipeline_mode<synchronous>, transform_indices = @transform_1, window_bounds = array<i64: 32, 3072>}, {pipeline_mode = #tpu.pipeline_mode<synchronous>, transform_indices = @transform_2, window_bounds = array<i64: 1, 3072>}, {transform_indices = @transform_3, window_bounds = array<i64: 16, 3072>}]} {
    %c0 = arith.constant 0 : index
    %c0_0 = arith.constant 0 : index
    %0 = vector.load %arg1[%c0, %c0_0] : memref<16x32xf32, #tpu.memory_space<vmem>>, vector<16x32xf32>
    %1 = arith.truncf %0 : vector<16x32xf32> to vector<16x32xbf16>
    %c0_1 = arith.constant 0 : index
    %c0_2 = arith.constant 0 : index
    %2 = vector.load %arg2[%c0_1, %c0_2] : memref<32x3072xbf16, #tpu.memory_space<vmem>>, vector<32x3072xbf16>
    %cst = arith.constant dense<0.000000e+00> : vector<16x3072xf32>
    %3 = tpu.matmul %1, %2, %cst {dimension_numbers = #tpu.dot_dimension_numbers<[1], [0], [0], [1], [0, 0, 1, 1], [], []>} : vector<16x32xbf16>, vector<32x3072xbf16>, vector<16x3072xf32> -> vector<16x3072xf32>
    %c0_3 = arith.constant 0 : index
    %c0_4 = arith.constant 0 : index
    %4 = vector.load %arg3[%c0_3, %c0_4] : memref<1x3072xf32, #tpu.memory_space<vmem>>, vector<1x3072xf32>
    %5 = vector.broadcast %4 : vector<1x3072xf32> to vector<16x3072xf32>
    %6 = arith.addf %3, %5 : vector<16x3072xf32>
    %c0_5 = arith.constant 0 : index
    %c0_6 = arith.constant 0 : index
    %7 = vector.load %arg4[%c0_5, %c0_6] : memref<16x3072xf32, #tpu.memory_space<vmem>>, vector<16x3072xf32>
    tpu.vector_store %arg4[%c0_5, %c0_6], %6 {strides = array<i32>} : memref<16x3072xf32, #tpu.memory_space<vmem>>, vector<16x3072xf32>,
    return
  }
  func.func @transform_0(%arg0: i32) -> (i32, i32) {
    %c0_i32 = arith.constant 0 : i32
    %c0_i32_0 = arith.constant 0 : i32
    return %arg0, %c0_i32 : i32, i32
  }
  func.func @transform_1(%arg0: i32) -> (i32, i32) {
    %c0_i32 = arith.constant 0 : i32
    %c0_i32_0 = arith.constant 0 : i32
    %c0_i32_1 = arith.constant 0 : i32
    return %c0_i32, %c0_i32_0 : i32, i32
  }
  func.func @transform_2(%arg0: i32) -> (i32, i32) {
    %c0_i32 = arith.constant 0 : i32
    %c0_i32_0 = arith.constant 0 : i32
    %c0_i32_1 = arith.constant 0 : i32
    return %c0_i32, %c0_i32_0 : i32, i32
  }
  func.func @transform_3(%arg0: i32) -> (i32, i32) {
    %c0_i32 = arith.constant 0 : i32
    %c0_i32_0 = arith.constant 0 : i32
    return %arg0, %c0_i32 : i32, i32
  }
}

</mosaic_0001>

<llo_original>
// kernel: worldmodel_forward_seq.4
$region0: #{worldmodel_forward_seq.4}
  #allocation0 [shape = 'u32[]', space=smem, size = 0x4, offset = 0x4, fixed_abs, tag = 'smem constant byte address 0x4 - core index']
  #allocation1 [shape = 'u32[144,128]{1,0:T(1,128)}', space=vmem, size = 0x12000, scoped, tag = 'internal scratch']
  %s0 = inlined_call_operand.vmem [shape: f32[1,8,128], index: 0, kind: input, shape index: {}]
  %s1 = inlined_call_operand.vmem [shape: f32[8,32], index: 1, kind: input, shape index: {}]
  %s2 = inlined_call_operand.vmem [shape: f32[8,32], index: 2, kind: input, shape index: {}]
  %s3 = inlined_call_operand.vmem [shape: bf16[32,128], index: 3, kind: input, shape index: {}]
  %s4 = inlined_call_operand.vmem [shape: f32[1,8,32], index: 4, kind: output, shape index: {0}]
  %s5 = inlined_call_operand.vmem [shape: f32[8,32], index: 5, kind: output, shape index: {1}]
  %s6 = inlined_call_operand.vmem [shape: f32[8,32], index: 6, kind: output, shape index: {2}]
  %7 = xla_tuple %s4, %s5, %s6
  %s8 = sld [smem:[#allocation0]]
  $region42: #{worldmodel_forward_seq.4} parent=0
    _
  %s10 = ssub.s32 1, %s8
  %s11 = scalar_select 0, %s10, %s8
  // Predicated region
  $region2: #{worldmodel_forward_seq.4} parent=0 // pred_check
    _
  $region3: #{worldmodel_forward_seq.4} parent=0 // pred_check_branch
    %13 = sbr.rel (0) target = $region5
  $region4: #{worldmodel_forward_seq.4} parent=0 // pred_region
    _
  $region5: #{worldmodel_forward_seq.4} parent=0 // pred_fallthru
    _
  // Predicated region
  $region6: #{worldmodel_forward_seq.4} parent=0 // pred_check
    _
  $region7: #{worldmodel_forward_seq.4} parent=0 // pred_check_branch
    %15 = sbr.rel (0) target = $region9
  $region8: #{worldmodel_forward_seq.4} parent=0 // pred_region
    _
  $region9: #{worldmodel_forward_seq.4} parent=0 // pred_fallthru
    _
  // Predicated region
  $region10: #{worldmodel_forward_seq.4} parent=0 // pred_check
    _
  $region11: #{worldmodel_forward_seq.4} parent=0 // pred_check_branch
    %17 = sbr.rel (0) target = $region13
  $region12: #{worldmodel_forward_seq.4} parent=0 // pred_region
    _
  $region13: #{worldmodel_forward_seq.4} parent=0 // pred_fallthru
    _
  // Predicated region
  $region14: #{worldmodel_forward_seq.4} parent=0 // pred_check
    _
  $region15: #{worldmodel_forward_seq.4} parent=0 // pred_check_branch
    %19 = sbr.rel (0) target = $region17
  $region16: #{worldmodel_forward_seq.4} parent=0 // pred_region
    _
  $region17: #{worldmodel_forward_seq.4} parent=0 // pred_fallthru
    _
  %v21 = vld [vmem:[%s3] sm:$0xf]
  %v22 = vld [vmem:[%s3 + $0x4] sm:$0xf]
  %v23 = vld [vmem:[%s3 + $0x8] sm:$0xf]
  %v24 = vld [vmem:[%s3 + $0xc] sm:$0xf]
  %v25 = vld [vmem:[%s1] sm:$0xff]
  %v26 = vld [vmem:[%s2] sm:$0xff]
  %v27 = vld [vmem:[%s0] sm:$0xff]
  %v28 = vpack.c.bf16 %v25, %v25
  %v33 = vunpack.c.l.b16 %v21
  %v34 = vunpack.c.l.b16 %v22
  %v35 = vunpack.c.l.b16 %v23
  %v36 = vunpack.c.l.b16 %v24
  %v37 = vpack.c.b16 %v34, %v33
  %v38 = vpack.c.b16 %v36, %v35
  %vm41 = vcmask 261120
  %v43 = vsel %vm41, %v28, 0
  %45 = vmatprep.subr.bf16.mxu0 0
  %46 = vmatpush1.bf16.msra.mxu0 %v37
  %47 = vmatprep.subr.bf16.mxu0 0
  %48 = vmatpush1.bf16.msra.mxu0 %v38
  %49 = vmatprep.subr.bf16.mxu0 0
  %50 = vmatpush1.bf16.msra.mxu0 0
  %51 = vmatprep.subr.bf16.mxu0 0
  %52 = vmatpush1.bf16.msra.mxu0 0
  %53 = vmatprep.subr.bf16.mxu0 0
  %54 = vmatpush1.bf16.msra.mxu0 0
  %55 = vmatprep.subr.bf16.mxu0 0
  %56 = vmatpush1.bf16.msra.mxu0 0
  %57 = vmatprep.subr.bf16.mxu0 0
  %58 = vmatpush1.bf16.msra.mxu0 0
  %59 = vmatprep.subr.bf16.mxu0 0
  %60 = vmatpush1.bf16.msra.mxu0 0
  %61 = vmatprep.subr.bf16.mxu0 0
  %62 = vmatpush1.bf16.msra.mxu0 0
  %63 = vmatprep.subr.bf16.mxu0 0
  %64 = vmatpush1.bf16.msra.mxu0 0
  %65 = vmatprep.subr.bf16.mxu0 0
  %66 = vmatpush1.bf16.msra.mxu0 0
  %67 = vmatprep.subr.bf16.mxu0 0
  %68 = vmatpush1.bf16.msra.mxu0 0
  %69 = vmatprep.subr.bf16.mxu0 0
  %70 = vmatpush1.bf16.msra.mxu0 0
  %71 = vmatprep.subr.bf16.mxu0 0
  %72 = vmatpush1.bf16.msra.mxu0 0
  %73 = vmatprep.subr.bf16.mxu0 0
  %74 = vmatpush1.bf16.msra.mxu0 0
  %75 = vmatprep.subr.bf16.mxu0 0
  %76 = vmatpush1.bf16.msra.mxu0 0
  %77 = vmatprep.mubr.bf16.mxu0 0
  %78 = vmatmul.mubr.bf16.gmra.mrb[0].mxu0 %v43
  %v79 = vpop.f32.mrb[0].mxu0
  %v80 = vadd.f32 0.0, %v79
  %v81 = vpop.f32.mrb[0].mxu0
  %v82 = vpop.f32.mrb[0].mxu0
  %v83 = vpop.f32.mrb[0].mxu0
  %84 = vdwg.mxu0
  %v85 = vadd.f32 %v27, %v80
  %v86 = vxor.u32 %v85, 2147483648
  %v87 = vmul.f32 %v86, 1.442695
  %v88 = vpow.pop %v87
  %v89 = vadd.f32 %v88, 1.0
  %v90 = vrcp.pop %v89
  %v91 = vmul.f32 1.0, %v90
  %v92 = vtanh.pop %v85
  %94 = vrot.lane.b32.xlu0 %v26, 32
  %v95 = vpop.permute.xlu0 %94
  %v97 = vmul.f32 %v91, %v95
  %99 = vrot.lane.b32.xlu0 %v92, 64
  %v100 = vpop.permute.xlu0 %99
  %v102 = vmul.f32 %v91, %v100
  %104 = vrot.lane.b32.xlu0 %v102, 32
  %v105 = vpop.permute.xlu0 %104
  %v107 = vadd.f32 %v97, %v105
  %v108 = vtanh.pop %v107
  %110 = vrot.lane.b32.xlu0 %v108, 64
  %v111 = vpop.permute.xlu0 %110
  %v113 = vmul.f32 %v91, %v111
  %115 = vrot.lane.b32.xlu0 %v113, 32
  %v116 = vpop.permute.xlu0 %115
  %118 = vst.msk [vmem:[%s4] sm:$0xff] %vm41, %v116
  %119 = vst.msk [vmem:[%s5] sm:$0xff] %vm41, %v116
  %121 = vrot.lane.b32.xlu0 %v107, 96
  %v122 = vpop.permute.xlu0 %121
  %124 = vst.msk [vmem:[%s6] sm:$0xff] %vm41, %v122
  // Predicated region
  $region18: #{worldmodel_forward_seq.4} parent=0 // pred_check
    _
  $region19: #{worldmodel_forward_seq.4} parent=0 // pred_check_branch
    %126 = sbr.rel (0) target = $region21
  $region20: #{worldmodel_forward_seq.4} parent=0 // pred_region
    _
  $region21: #{worldmodel_forward_seq.4} parent=0 // pred_fallthru
    _
  // Predicated region
  $region22: #{worldmodel_forward_seq.4} parent=0 // pred_check
    _
  $region23: #{worldmodel_forward_seq.4} parent=0 // pred_check_branch
    %128 = sbr.rel (0) target = $region25
  $region24: #{worldmodel_forward_seq.4} parent=0 // pred_region
    _
  $region25: #{worldmodel_forward_seq.4} parent=0 // pred_fallthru
    _
  // Predicated region
  $region26: #{worldmodel_forward_seq.4} parent=0 // pred_check
    _
  $region27: #{worldmodel_forward_seq.4} parent=0 // pred_check_branch
    %130 = sbr.rel (0) target = $region29
  $region28: #{worldmodel_forward_seq.4} parent=0 // pred_region
    _
  $region29: #{worldmodel_forward_seq.4} parent=0 // pred_fallthru
    _
  // Predicated region
  $region30: #{worldmodel_forward_seq.4} parent=0 // pred_check
    _
  $region31: #{worldmodel_forward_seq.4} parent=0 // pred_check_branch
    %132 = sbr.rel (0) target = $region33
  $region32: #{worldmodel_forward_seq.4} parent=0 // pred_region
    _
  $region33: #{worldmodel_forward_seq.4} parent=0 // pred_fallthru
    _
  // Predicated region
  $region34: #{worldmodel_forward_seq.4} parent=0 // pred_check
    _
  $region35: #{worldmodel_forward_seq.4} parent=0 // pred_check_branch
    %134 = sbr.rel (0) target = $region37
  $region36: #{worldmodel_forward_seq.4} parent=0 // pred_region
    _
  $region37: #{worldmodel_forward_seq.4} parent=0 // pred_fallthru
    _
  // Predicated region
  $region38: #{worldmodel_forward_seq.4} parent=0 // pred_check
    _
  $region39: #{worldmodel_forward_seq.4} parent=0 // pred_check_branch
    %136 = sbr.rel (0) target = $region41
  $region40: #{worldmodel_forward_seq.4} parent=0 // pred_region
    _
  $region41: #{worldmodel_forward_seq.4} parent=0 // pred_fallthru
    _

// kernel: worldmodel_forward_seq.3
$region0: #{worldmodel_forward_seq.3}
  #allocation0 [shape = 'u32[]', space=smem, size = 0x4, offset = 0x4, fixed_abs, tag = 'smem constant byte address 0x4 - core index']
  #allocation1 [shape = 'u32[144,128]{1,0:T(1,128)}', space=vmem, size = 0x12000, scoped, tag = 'internal scratch']
  #allocation2 [shape = 'f32[16,128]{1,0:T(8,128)}', space=vmem, size = 0x2000, scoped, tag = 'scratch operand']
  %s0 = inlined_call_operand.vmem [shape: bf16[16,3072], index: 0, kind: input, shape index: {}]
  %s1 = inlined_call_operand.vmem [shape: f32[16,128], index: 1, kind: input, shape index: {}]
  %s2 = inlined_call_operand.hbm [shape: bf16[3072,128], index: 2, kind: input, shape index: {}]
  %s3 = inlined_call_operand.vmem [shape: f32[128,128], index: 3, kind: input, shape index: {}]
  %s4 = inlined_call_operand.vmem [shape: f32[1,128], index: 4, kind: input, shape index: {}]
  %s5 = inlined_call_operand.vmem [shape: f32[16,128], index: 5, kind: output, shape index: {}]
  %s6 = sld [smem:[#allocation0]]
  $region88: #{worldmodel_forward_seq.3} parent=0
    _
  %s8 = ssub.s32 1, %s6
  %s9 = scalar_select 0, %s8, %s6
  $region1: #{worldmodel_forward_seq.3} parent=0
    #allocation3 [shape = 'u8[32768]{0}', space=vmem, size = 0x8000, scoped, tag = 'input window, operand 0']
    #allocation4 [shape = 'u8[262144]{0}', space=vmem, size = 0x40000, scoped, tag = 'input window, operand 2']
    #allocation5 [shape = 's32[2]{0}', space=sflag, size = 0x8, scoped, tag = 'scoped memory for worldmodel_forward_seq.3']
    %10 = vsyncpa [#allocation5], 0
    %s11 = scalar_lea.sflag [#allocation5], 1
    %12 = vsyncpa %s11, 0
    loop: start=0, step=1, limit=8
    $region2: #{worldmodel_forward_seq.3} parent=1 // loop_pre_header
      _
    $region3: #{worldmodel_forward_seq.3} parent=1 // loop_header
      %s14 = sphi 0, %s18
      %p15 = scmp.ge.s32.totalorder %s14, 8
      %s21 = sphi 0, %s33
      %s22 = sphi 0, %s29
      %s23 = sphi 0, %s21
      %s24 = sphi 0, %s22
      %s25 = sphi 0, %s23
      %s26 = sphi 0, %s24
      %s38 = sphi 0, %s40
      %s41 = sphi 0, %s38
      %s42 = sphi 0, %s41
      %s58 = sphi 0, %s42
      %s64 = sphi 0, %s66
      %s67 = sphi 0, %s64
      %s68 = sphi 0, %s67
      %s84 = sphi 0, %s68
      %s90 = sphi 0, %s92
      %s93 = sphi 0, %s90
      %s94 = sphi 0, %s93
      %s110 = sphi 0, %s94
      %s114 = sphi 0, %s114
      %s116 = sphi 0, %s114
      %s117 = sphi 0, %s116
      %s131 = sphi 0, %s117
      %s135 = sphi 0, %s135
      %s137 = sphi 0, %s135
      %s138 = sphi 0, %s137
      %s152 = sphi 0, %s138
      %s158 = sphi 0, %s160
      %s161 = sphi 0, %s158
      %s162 = sphi 0, %s161
      %s178 = sphi 0, %s162
    $region4: #{worldmodel_forward_seq.3} parent=1 // loop_header_branch
      %17 = sbr.rel (%p15) target = $region8
    $region5: #{worldmodel_forward_seq.3} parent=1 // loop_body
      %s19 = ssub.s32 %s14, 1
      %s20 = ssub.s32 %s14, 2
      %s27 = sadd.s32 1, %s22
      %p28 = scmp.ge.s32.totalorder %s27, 6
      %s29 = scalar_select %p28, 0, %s27
      %s30 = sadd.s32 1, %s21
      %s31 = scalar_select %p28, %s30, %s21
      %p32 = scmp.ge.s32.totalorder %s31, 1
      %s33 = scalar_select %p32, 0, %s31
      %s34 = ssub.s32 %s21, %s33
      %s35 = ssub.s32 %s22, %s29
      %s36 = sor.u32 %s34, %s35
      %p37 = scmp.eq.s32.totalorder %s36, 0
      %s39 = sadd.s32 %s38, 1
      %s40 = scalar_select %p37, %s38, %s39
      %p43 = pneg %p37
      %p44 = scmp.eq.s32.totalorder %s14, 5
      %p45 = por %p43, %p44
      %p46 = scmp.ne.s32.totalorder %s38, %s41
      %p47 = scmp.eq.s32.totalorder %s14, 0
      %p48 = por %p46, %p47
      %p49 = scmp.ne.s32.totalorder %s38, %s41
      %p50 = scmp.eq.s32.totalorder %s19, 5
      %p51 = por %p49, %p50
      %p52 = scmp.ne.s32.totalorder %s41, %s42
      %p53 = scmp.eq.s32.totalorder %s19, 0
      %p54 = por %p52, %p53
      %p55 = scmp.ne.s32.totalorder %s41, %s42
      %p56 = scmp.eq.s32.totalorder %s20, 5
      %p57 = por %p55, %p56
      %p59 = scmp.ne.s32.totalorder %s42, %s58
      %p60 = scmp.eq.s32.totalorder %s20, 0
      %p61 = por %p59, %p60
      %s62 = ssub.s32 %s21, %s33
      %p63 = scmp.eq.s32.totalorder %s62, 0
      %s65 = sadd.s32 %s64, 1
      %s66 = scalar_select %p63, %s64, %s65
      %p69 = pneg %p63
      %p70 = scmp.eq.s32.totalorder %s14, 5
      %p71 = por %p69, %p70
      %p72 = scmp.ne.s32.totalorder %s64, %s67
      %p73 = scmp.eq.s32.totalorder %s14, 0
      %p74 = por %p72, %p73
      %p75 = scmp.ne.s32.totalorder %s64, %s67
      %p76 = scmp.eq.s32.totalorder %s19, 5
      %p77 = por %p75, %p76
      %p78 = scmp.ne.s32.totalorder %s67, %s68
      %p79 = scmp.eq.s32.totalorder %s19, 0
      %p80 = por %p78, %p79
      %p81 = scmp.ne.s32.totalorder %s67, %s68
      %p82 = scmp.eq.s32.totalorder %s20, 5
      %p83 = por %p81, %p82
      %p85 = scmp.ne.s32.totalorder %s68, %s84
      %p86 = scmp.eq.s32.totalorder %s20, 0
      %p87 = por %p85, %p86
      %s88 = ssub.s32 %s22, %s29
      %p89 = scmp.eq.s32.totalorder %s88, 0
      %s91 = sadd.s32 %s90, 1
      %s92 = scalar_select %p89, %s90, %s91
      %p95 = pneg %p89
      %p96 = scmp.eq.s32.totalorder %s14, 5
      %p97 = por %p95, %p96
      %p98 = scmp.ne.s32.totalorder %s90, %s93
      %p99 = scmp.eq.s32.totalorder %s14, 0
      %p100 = por %p98, %p99
      %p101 = scmp.ne.s32.totalorder %s90, %s93
      %p102 = scmp.eq.s32.totalorder %s19, 5
      %p103 = por %p101, %p102
      %p104 = scmp.ne.s32.totalorder %s93, %s94
      %p105 = scmp.eq.s32.totalorder %s19, 0
      %p106 = por %p104, %p105
      %p107 = scmp.ne.s32.totalorder %s93, %s94
      %p108 = scmp.eq.s32.totalorder %s20, 5
      %p109 = por %p107, %p108
      %p111 = scmp.ne.s32.totalorder %s94, %s110
      %p112 = scmp.eq.s32.totalorder %s20, 0
      %p113 = por %p111, %p112
      %s115 = sadd.s32 %s114, 1
      %p118 = scmp.eq.s32.totalorder %s14, 5
      %p119 = scmp.ne.s32.totalorder %s114, %s116
      %p120 = scmp.eq.s32.totalorder %s14, 0
      %p121 = por %p119, %p120
      %p122 = scmp.ne.s32.totalorder %s114, %s116
      %p123 = scmp.eq.s32.totalorder %s19, 5
      %p124 = por %p122, %p123
      %p125 = scmp.ne.s32.totalorder %s116, %s117
      %p126 = scmp.eq.s32.totalorder %s19, 0
      %p127 = por %p125, %p126
      %p128 = scmp.ne.s32.totalorder %s116, %s117
      %p129 = scmp.eq.s32.totalorder %s20, 5
      %p130 = por %p128, %p129
      %p132 = scmp.ne.s32.totalorder %s117, %s131
      %p133 = scmp.eq.s32.totalorder %s20, 0
      %p134 = por %p132, %p133
      %s136 = sadd.s32 %s135, 1
      %p139 = scmp.eq.s32.totalorder %s14, 5
      %p140 = scmp.ne.s32.totalorder %s135, %s137
      %p141 = scmp.eq.s32.totalorder %s14, 0
      %p142 = por %p140, %p141
      %p143 = scmp.ne.s32.totalorder %s135, %s137
      %p144 = scmp.eq.s32.totalorder %s19, 5
      %p145 = por %p143, %p144
      %p146 = scmp.ne.s32.totalorder %s137, %s138
      %p147 = scmp.eq.s32.totalorder %s19, 0
      %p148 = por %p146, %p147
      %p149 = scmp.ne.s32.totalorder %s137, %s138
      %p150 = scmp.eq.s32.totalorder %s20, 5
      %p151 = por %p149, %p150
      %p153 = scmp.ne.s32.totalorder %s138, %s152
      %p154 = scmp.eq.s32.totalorder %s20, 0
      %p155 = por %p153, %p154
      %s156 = ssub.s32 %s21, %s33
      %p157 = scmp.eq.s32.totalorder %s156, 0
      %s159 = sadd.s32 %s158, 1
      %s160 = scalar_select %p157, %s158, %s159
      %p163 = pneg %p157
      %p164 = scmp.eq.s32.totalorder %s14, 5
      %p165 = por %p163, %p164
      %p166 = scmp.ne.s32.totalorder %s158, %s161
      %p167 = scmp.eq.s32.totalorder %s14, 0
      %p168 = por %p166, %p167
      %p169 = scmp.ne.s32.totalorder %s158, %s161
      %p170 = scmp.eq.s32.totalorder %s19, 5
      %p171 = por %p169, %p170
      %p172 = scmp.ne.s32.totalorder %s161, %s162
      %p173 = scmp.eq.s32.totalorder %s19, 0
      %p174 = por %p172, %p173
      %p175 = scmp.ne.s32.totalorder %s161, %s162
      %p176 = scmp.eq.s32.totalorder %s20, 5
      %p177 = por %p175, %p176
      %p179 = scmp.ne.s32.totalorder %s162, %s178
      %p180 = scmp.eq.s32.totalorder %s20, 0
      %p181 = por %p179, %p180
      %p182 = scmp.le.s32.totalorder 1, %s14
      %p183 = scmp.lt.s32.totalorder %s14, 7
      %p184 = pnand %p182, %p183
      %p185 = pneg %p184
      // Predicated region
      $region9: #{worldmodel_forward_seq.3} parent=5 // pred_check
        _
      $region10: #{worldmodel_forward_seq.3} parent=5 // pred_check_branch
        %187 = sbr.rel (%p184) target = $region12
      $region11: #{worldmodel_forward_seq.3} parent=5 // pred_region
        %s188 = ssub.s32 %s14, 1
        // Predicated region
        $region13: #{worldmodel_forward_seq.3} parent=11 // pred_check
          %p189 = pneg %p80
        $region14: #{worldmodel_forward_seq.3} parent=11 // pred_check_branch
          %191 = sbr.rel (%p189) target = $region16
        $region15: #{worldmodel_forward_seq.3} parent=11 // pred_region
          %s192 = smul.u32 2, %s23
          %p193 = scmp.lt.s32.totalorder %s192, 1
          %s194 = scalar_select %p193, %s192, 1
          %s195 = smul.addr %s194, 8
          %s196 = scalar_lea.vmem %s1, %s195
          %s197 = smul.u32 2, %s23
        $region16: #{worldmodel_forward_seq.3} parent=11 // pred_fallthru
          _
        // Predicated region
        $region17: #{worldmodel_forward_seq.3} parent=11 // pred_check
          %p198 = pneg %p127
        $region18: #{worldmodel_forward_seq.3} parent=11 // pred_check_branch
          %200 = sbr.rel (%p198) target = $region20
        $region19: #{worldmodel_forward_seq.3} parent=11 // pred_region
          _
        $region20: #{worldmodel_forward_seq.3} parent=11 // pred_fallthru
          _
        // Predicated region
        $region21: #{worldmodel_forward_seq.3} parent=11 // pred_check
          %p201 = pneg %p148
        $region22: #{worldmodel_forward_seq.3} parent=11 // pred_check_branch
          %203 = sbr.rel (%p201) target = $region24
        $region23: #{worldmodel_forward_seq.3} parent=11 // pred_region
          _
        $region24: #{worldmodel_forward_seq.3} parent=11 // pred_fallthru
          _
      $region12: #{worldmodel_forward_seq.3} parent=5 // pred_fallthru
        _
      %p204 = scmp.lt.s32.totalorder %s14, 6
      // Predicated region
      $region25: #{worldmodel_forward_seq.3} parent=5 // pred_check
        %p205 = pneg %p204
      $region26: #{worldmodel_forward_seq.3} parent=5 // pred_check_branch
        %207 = sbr.rel (%p205) target = $region28
      $region27: #{worldmodel_forward_seq.3} parent=5 // pred_region
        // Predicated region
        $region29: #{worldmodel_forward_seq.3} parent=27 // pred_check
          %p208 = pneg %p48
        $region30: #{worldmodel_forward_seq.3} parent=27 // pred_check_branch
          %210 = sbr.rel (%p208) target = $region32
        $region31: #{worldmodel_forward_seq.3} parent=27 // pred_region
          %s211 = sand.u32 %s38, 1
          %s212 = sand.u32 %s38, 1
          %s213 = smul.addr %s212, 32
          %s214 = scalar_lea.vmem [#allocation3], %s213
          %s215 = smul.u32 2, %s21
          %s216 = smul.u32 4, %s22
          %s217 = smul.addr %s215, 24
          %s218 = sadd.s32 %s216, %s217
          %s219 = smul.addr %s218, 4
          %s220 = scalar_lea.vmem %s0, %s219
          // Predicated region
          $region33: #{worldmodel_forward_seq.3} parent=31 // pred_check
            _
          $region34: #{worldmodel_forward_seq.3} parent=31 // pred_check_branch
            %222 = sbr.rel (0) target = $region36
          $region35: #{worldmodel_forward_seq.3} parent=31 // pred_region
            // Predicated region
            $region37: #{worldmodel_forward_seq.3} parent=35 // pred_check
              _
            $region38: #{worldmodel_forward_seq.3} parent=35 // pred_check_branch
              %224 = sbr.rel (0) target = $region40
            $region39: #{worldmodel_forward_seq.3} parent=35 // pred_region
              loop: start=0, step=1, limit=1
              $region41: #{worldmodel_forward_seq.3} parent=39 // loop_pre_header
                _
              $region42: #{worldmodel_forward_seq.3} parent=39 // loop_header
                %s226 = sphi 0, %s230
                %p227 = scmp.ge.s32.totalorder %s226, 1
                %s231 = sphi %s220, %s220
                %s232 = sphi %s214, %s214
              $region43: #{worldmodel_forward_seq.3} parent=39 // loop_header_branch
                %229 = sbr.rel (%p227) target = $region47
              $region44: #{worldmodel_forward_seq.3} parent=39 // loop_body
                %v233 = vld [vmem:[%s231] sm:$0xff]
                %234 = vst [vmem:[%s232] sm:$0xff] %v233
                %v235 = vld [vmem:[%s231 + $0x8] sm:$0xff]
                %236 = vst [vmem:[%s232 + $0x8] sm:$0xff] %v235
                %v237 = vld [vmem:[%s231 + $0x60] sm:$0xff]
                %238 = vst [vmem:[%s232 + $0x10] sm:$0xff] %v237
                %v239 = vld [vmem:[%s231 + $0x68] sm:$0xff]
                %240 = vst [vmem:[%s232 + $0x18] sm:$0xff] %v239
              $region45: #{worldmodel_forward_seq.3} parent=39 // loop_footer
                %s230 = sadd.s32 1, %s226
              $region46: #{worldmodel_forward_seq.3} parent=39 // loop_footer_branch
                %225 = sbr.rel target = $region42
              $region47: #{worldmodel_forward_seq.3} parent=39 // loop_exit
                _
            $region40: #{worldmodel_forward_seq.3} parent=35 // pred_fallthru
              _
            // Predicated region
            $region48: #{worldmodel_forward_seq.3} parent=35 // pred_check
              _
            $region49: #{worldmodel_forward_seq.3} parent=35 // pred_check_branch
              %242 = sbr.rel target = $region51
            $region50: #{worldmodel_forward_seq.3} parent=35 // pred_region
              _
            $region51: #{worldmodel_forward_seq.3} parent=35 // pred_fallthru
              _
          $region36: #{worldmodel_forward_seq.3} parent=31 // pred_fallthru
            _
          %243 = vnop
        $region32: #{worldmodel_forward_seq.3} parent=27 // pred_fallthru
          _
        // Predicated region
        $region52: #{worldmodel_forward_seq.3} parent=27 // pred_check
          %p244 = pneg %p100
        $region53: #{worldmodel_forward_seq.3} parent=27 // pred_check_branch
          %246 = sbr.rel (%p244) target = $region55
        $region54: #{worldmodel_forward_seq.3} parent=27 // pred_region
          %s247 = sand.u32 %s90, 1
          %s248 = scalar_lea.sflag [#allocation5], %s247
          %s249 = sand.u32 %s90, 1
          %s250 = smul.addr %s249, 256
          %s251 = scalar_lea.vmem [#allocation4], %s250
          %s252 = smul.u32 64, %s22
          %s254 = ssub.s32 4096, 4096
          %255 = vsyncadd %s248, %s254
          %s256 = smul.addr %s252, 64
          %s257 = scalar_lea.hbm %s2, %s256
          %s258 = sshll.u32 %s251, 4
          %s259 = int_to_ptr.vmem [resolvable:$true] %s258
          %264 = dma.hbm_to_vmem [thread:$0]  %s257, 4096, %s259, %s248, 64, 64, 4
        $region55: #{worldmodel_forward_seq.3} parent=27 // pred_fallthru
          _
      $region28: #{worldmodel_forward_seq.3} parent=5 // pred_fallthru
        _
      %p265 = scmp.le.s32.totalorder 1, %s14
      %p266 = scmp.lt.s32.totalorder %s14, 7
      %p267 = pnand %p265, %p266
      %p268 = pneg %p267
      // Predicated region
      $region56: #{worldmodel_forward_seq.3} parent=5 // pred_check
        _
      $region57: #{worldmodel_forward_seq.3} parent=5 // pred_check_branch
        %270 = sbr.rel (%p267) target = $region59
      $region58: #{worldmodel_forward_seq.3} parent=5 // pred_region
        %s271 = ssub.s32 %s14, 1
        %s272 = sand.u32 %s41, 1
        %s273 = sand.u32 %s41, 1
        %s274 = smul.addr %s273, 32
        %s275 = scalar_lea.vmem [#allocation3], %s274
        // Predicated region
        $region60: #{worldmodel_forward_seq.3} parent=58 // pred_check
          %p276 = pneg %p54
        $region61: #{worldmodel_forward_seq.3} parent=58 // pred_check_branch
          %278 = sbr.rel (%p276) target = $region63
        $region62: #{worldmodel_forward_seq.3} parent=58 // pred_region
          _
        $region63: #{worldmodel_forward_seq.3} parent=58 // pred_fallthru
          _
        %s279 = sand.u32 %s93, 1
        %s280 = scalar_lea.sflag [#allocation5], %s279
        %s281 = sand.u32 %s93, 1
        %s282 = smul.addr %s281, 256
        %s283 = scalar_lea.vmem [#allocation4], %s282
        // Predicated region
        $region64: #{worldmodel_forward_seq.3} parent=58 // pred_check
          %p284 = pneg %p106
        $region65: #{worldmodel_forward_seq.3} parent=58 // pred_check_branch
          %286 = sbr.rel (%p284) target = $region67
        $region66: #{worldmodel_forward_seq.3} parent=58 // pred_region
          %287 = dma.done %s280, 4096
        $region67: #{worldmodel_forward_seq.3} parent=58 // pred_fallthru
          _
        %s288 = sand.u32 %s41, 1
        %s289 = sand.u32 %s41, 1
        %s290 = smul.addr %s289, 32
        %s291 = scalar_lea.vmem [#allocation3], %s290
        %p292 = pneg %p54
        %p293 = pneg %p51
        %s294 = smul.u32 2, %s23
        %p295 = scmp.lt.s32.totalorder %s294, 1
        %s296 = scalar_select %p295, %s294, 1
        %s297 = smul.addr %s296, 8
        %s298 = scalar_lea.vmem %s1, %s297
        %p299 = pneg %p80
        %p300 = pneg %p77
        %s301 = sand.u32 %s93, 1
        %s302 = scalar_lea.sflag [#allocation5], %s301
        %s303 = sand.u32 %s93, 1
        %s304 = smul.addr %s303, 256
        %s305 = scalar_lea.vmem [#allocation4], %s304
        %p306 = pneg %p106
        %p307 = pneg %p103
        %p308 = pneg %p127
        %p309 = pneg %p124
        %p310 = pneg %p148
        %p311 = pneg %p145
        %p312 = pneg %p174
        %p313 = pneg %p171
        %s314 = smul.u32 2, %s23
        %p315 = scmp.lt.s32.totalorder %s314, 1
        %s316 = scalar_select %p315, %s314, 1
        %s317 = smul.addr %s316, 8
        %s318 = scalar_lea.vmem %s5, %s317
        %s319 = smul.u32 2, %s23
        %s320 = smul.u32 4, %s24
        %s321 = smul.u32 2, %s23
        %p322 = scmp.lt.s32.totalorder %s321, 1
        %s323 = scalar_select %p322, %s321, 1
        %s324 = smul.addr %s323, 8
        %s325 = scalar_lea.vmem %s1, %s324
        %s326 = smul.u32 2, %s23
        %s327 = smul.u32 64, %s24
        %s328 = smul.u32 2, %s23
        %p329 = scmp.lt.s32.totalorder %s328, 1
        %s330 = scalar_select %p329, %s328, 1
        %s331 = smul.addr %s330, 8
        %s332 = scalar_lea.vmem %s5, %s331
        %s333 = smul.u32 2, %s23
        %p335 = scmp.eq.s32.totalorder %s24, 0
        // Predicated region
        $region68: #{worldmodel_forward_seq.3} parent=58 // pred_check
          %p336 = pneg %p335
        $region69: #{worldmodel_forward_seq.3} parent=58 // pred_check_branch
          %338 = sbr.rel (%p336) target = $region71
        $region70: #{worldmodel_forward_seq.3} parent=58 // pred_region
          %v339 = vld [vmem:[%s325] sm:$0xff]
          %v340 = vld [vmem:[%s325 + $0x8] sm:$0xff]
          %v341 = vld [vmem:[%s3] sm:$0xff]
          %v342 = vld [vmem:[%s3 + $0x8] sm:$0xff]
          %v343 = vld [vmem:[%s3 + $0x10] sm:$0xff]
          %v344 = vld [vmem:[%s3 + $0x18] sm:$0xff]
          %v345 = vld [vmem:[%s3 + $0x20] sm:$0xff]
          %v346 = vld [vmem:[%s3 + $0x28] sm:$0xff]
          %v347 = vld [vmem:[%s3 + $0x30] sm:$0xff]
          %v348 = vld [vmem:[%s3 + $0x38] sm:$0xff]
          %v349 = vld [vmem:[%s3 + $0x40] sm:$0xff]
          %v350 = vld [vmem:[%s3 + $0x48] sm:$0xff]
          %v351 = vld [vmem:[%s3 + $0x50] sm:$0xff]
          %v352 = vld [vmem:[%s3 + $0x58] sm:$0xff]
          %v353 = vld [vmem:[%s3 + $0x60] sm:$0xff]
          %v354 = vld [vmem:[%s3 + $0x68] sm:$0xff]
          %v355 = vld [vmem:[%s3 + $0x70] sm:$0xff]
          %v356 = vld [vmem:[%s3 + $0x78] sm:$0xff]
          %v357 = vld [vmem:[%s4] sm:$0x1]
          %v359 = vlaneseq
          %v360 = vshrl.u32 %v359, 7
          %v361 = vsub.s32 0, %v360
          %v362 = vrot.slane %v357, %v361
          %364 = vmatprep.subr.mxu0 0.0
          %365 = vmatpush1.msra.mxu0 %v341
          %366 = vmatprep.subr.mxu0 0.0
          %367 = vmatpush1.msra.mxu0 %v342
          %368 = vmatprep.subr.mxu0 0.0
          %369 = vmatpush1.msra.mxu0 %v343
          %370 = vmatprep.subr.mxu0 0.0
          %371 = vmatpush1.msra.mxu0 %v344
          %372 = vmatprep.subr.mxu0 0.0
          %373 = vmatpush1.msra.mxu0 %v345
          %374 = vmatprep.subr.mxu0 0.0
          %375 = vmatpush1.msra.mxu0 %v346
          %376 = vmatprep.subr.mxu0 0.0
          %377 = vmatpush1.msra.mxu0 %v347
          %378 = vmatprep.subr.mxu0 0.0
          %379 = vmatpush1.msra.mxu0 %v348
          %380 = vmatprep.subr.mxu0 0.0
          %381 = vmatpush1.msra.mxu0 %v349
          %382 = vmatprep.subr.mxu0 0.0
          %383 = vmatpush1.msra.mxu0 %v350
          %384 = vmatprep.subr.mxu0 0.0
          %385 = vmatpush1.msra.mxu0 %v351
          %386 = vmatprep.subr.mxu0 0.0
          %387 = vmatpush1.msra.mxu0 %v352
          %388 = vmatprep.subr.mxu0 0.0
          %389 = vmatpush1.msra.mxu0 %v353
          %390 = vmatprep.subr.mxu0 0.0
          %391 = vmatpush1.msra.mxu0 %v354
          %392 = vmatprep.subr.mxu0 0.0
          %393 = vmatpush1.msra.mxu0 %v355
          %394 = vmatprep.subr.mxu0 0.0
          %395 = vmatpush1.msra.mxu0 %v356
          %396 = vmatprep.subr.mxu0 0.0
          %397 = vmatpush1.msra.mxu0 0.0
          %398 = vmatprep.subr.mxu0 0.0
          %399 = vmatpush1.msra.mxu0 0.0
          %400 = vmatprep.subr.mxu0 0.0
          %401 = vmatpush1.msra.mxu0 0.0
          %402 = vmatprep.subr.mxu0 0.0
          %403 = vmatpush1.msra.mxu0 0.0
          %404 = vmatprep.subr.mxu0 0.0
          %405 = vmatpush1.msra.mxu0 0.0
          %406 = vmatprep.subr.mxu0 0.0
          %407 = vmatpush1.msra.mxu0 0.0
          %408 = vmatprep.subr.mxu0 0.0
          %409 = vmatpush1.msra.mxu0 0.0
          %410 = vmatprep.subr.mxu0 0.0
          %411 = vmatpush1.msra.mxu0 0.0
          %412 = vmatprep.subr.mxu0 0.0
          %413 = vmatpush1.msra.mxu0 0.0
          %414 = vmatprep.subr.mxu0 0.0
          %415 = vmatpush1.msra.mxu0 0.0
          %416 = vmatprep.subr.mxu0 0.0
          %417 = vmatpush1.msra.mxu0 0.0
          %418 = vmatprep.subr.mxu0 0.0
          %419 = vmatpush1.msra.mxu0 0.0
          %420 = vmatprep.subr.mxu0 0.0
          %421 = vmatpush1.msra.mxu0 0.0
          %422 = vmatprep.subr.mxu0 0.0
          %423 = vmatpush1.msra.mxu0 0.0
          %424 = vmatprep.subr.mxu0 0.0
          %425 = vmatpush1.msra.mxu0 0.0
          %426 = vmatprep.subr.mxu0 0.0
          %427 = vmatpush1.msra.mxu0 0.0
          %428 = vmatprep.mubr.f32.mxu0 0.0
          %429 = vmatmul.mubr.f32.gmra.mrb[0].mxu0 %v339
          %v430 = vpop.f32.mrb[0].mxu0
          %v431 = vadd.f32 %v362, %v430
          %v432 = vpop.f32.mrb[0].mxu0
          %433 = vmatprep.mubr.f32.mxu0 0.0
          %434 = vmatmul.mubr.f32.gmra.mrb[0].mxu0 %v340
          %v435 = vpop.f32.mrb[0].mxu0
          %v436 = vadd.f32 %v362, %v435
          %v437 = vpop.f32.mrb[0].mxu0
          %438 = vdwg.mxu0
          %439 = vst [vmem:[#allocation2] sm:$0xff] %v431
          %440 = vst [vmem:[#allocation2 + $0x8] sm:$0xff] %v436
        $region71: #{worldmodel_forward_seq.3} parent=58 // pred_fallthru
          _
        %v441 = vld [vmem:[#allocation2] sm:$0xff]
        %v442 = vld [vmem:[#allocation2 + $0x8] sm:$0xff]
        %v443 = vld [vmem:[%s275] sm:$0xff]
        %v444 = vld [vmem:[%s275 + $0x8] sm:$0xff]
        %v445 = vld [vmem:[%s275 + $0x10] sm:$0xff]
        %v446 = vld [vmem:[%s275 + $0x18] sm:$0xff]
        %v447 = vld [vmem:[%s283] sm:$0xf]
        %v448 = vld [vmem:[%s283 + $0x4] sm:$0xf]
        %v449 = vld [vmem:[%s283 + $0x8] sm:$0xf]
        %v450 = vld [vmem:[%s283 + $0xc] sm:$0xf]
        %v451 = vld [vmem:[%s283 + $0x10] sm:$0xf]
        %v452 = vld [vmem:[%s283 + $0x14] sm:$0xf]
        %v453 = vld [vmem:[%s283 + $0x18] sm:$0xf]
        %v454 = vld [vmem:[%s283 + $0x1c] sm:$0xf]
        %v455 = vld [vmem:[%s283 + $0x20] sm:$0xf]
        %v456 = vld [vmem:[%s283 + $0x24] sm:$0xf]
        %v457 = vld [vmem:[%s283 + $0x28] sm:$0xf]
        %v458 = vld [vmem:[%s283 + $0x2c] sm:$0xf]
        %v459 = vld [vmem:[%s283 + $0x30] sm:$0xf]
        %v460 = vld [vmem:[%s283 + $0x34] sm:$0xf]
        %v461 = vld [vmem:[%s283 + $0x38] sm:$0xf]
        %v462 = vld [vmem:[%s283 + $0x3c] sm:$0xf]
        %v463 = vld [vmem:[%s283 + $0x40] sm:$0xf]
        %v464 = vld [vmem:[%s283 + $0x44] sm:$0xf]
        %v465 = vld [vmem:[%s283 + $0x48] sm:$0xf]
        %v466 = vld [vmem:[%s283 + $0x4c] sm:$0xf]
        %v467 = vld [vmem:[%s283 + $0x50] sm:$0xf]
        %v468 = vld [vmem:[%s283 + $0x54] sm:$0xf]
        %v469 = vld [vmem:[%s283 + $0x58] sm:$0xf]
        %v470 = vld [vmem:[%s283 + $0x5c] sm:$0xf]
        %v471 = vld [vmem:[%s283 + $0x60] sm:$0xf]
        %v472 = vld [vmem:[%s283 + $0x64] sm:$0xf]
        %v473 = vld [vmem:[%s283 + $0x68] sm:$0xf]
        %v474 = vld [vmem:[%s283 + $0x6c] sm:$0xf]
        %v475 = vld [vmem:[%s283 + $0x70] sm:$0xf]
        %v476 = vld [vmem:[%s283 + $0x74] sm:$0xf]
        %v477 = vld [vmem:[%s283 + $0x78] sm:$0xf]
        %v478 = vld [vmem:[%s283 + $0x7c] sm:$0xf]
        %v479 = vld [vmem:[%s283 + $0x80] sm:$0xf]
        %v480 = vld [vmem:[%s283 + $0x84] sm:$0xf]
        %v481 = vld [vmem:[%s283 + $0x88] sm:$0xf]
        %v482 = vld [vmem:[%s283 + $0x8c] sm:$0xf]
        %v483 = vld [vmem:[%s283 + $0x90] sm:$0xf]
        %v484 = vld [vmem:[%s283 + $0x94] sm:$0xf]
        %v485 = vld [vmem:[%s283 + $0x98] sm:$0xf]
        %v486 = vld [vmem:[%s283 + $0x9c] sm:$0xf]
        %v487 = vld [vmem:[%s283 + $0xa0] sm:$0xf]
        %v488 = vld [vmem:[%s283 + $0xa4] sm:$0xf]
        %v489 = vld [vmem:[%s283 + $0xa8] sm:$0xf]
        %v490 = vld [vmem:[%s283 + $0xac] sm:$0xf]
        %v491 = vld [vmem:[%s283 + $0xb0] sm:$0xf]
        %v492 = vld [vmem:[%s283 + $0xb4] sm:$0xf]
        %v493 = vld [vmem:[%s283 + $0xb8] sm:$0xf]
        %v494 = vld [vmem:[%s283 + $0xbc] sm:$0xf]
        %v495 = vld [vmem:[%s283 + $0xc0] sm:$0xf]
        %v496 = vld [vmem:[%s283 + $0xc4] sm:$0xf]
        %v497 = vld [vmem:[%s283 + $0xc8] sm:$0xf]
        %v498 = vld [vmem:[%s283 + $0xcc] sm:$0xf]
        %v499 = vld [vmem:[%s283 + $0xd0] sm:$0xf]
        %v500 = vld [vmem:[%s283 + $0xd4] sm:$0xf]
        %v501 = vld [vmem:[%s283 + $0xd8] sm:$0xf]
        %v502 = vld [vmem:[%s283 + $0xdc] sm:$0xf]
        %v503 = vld [vmem:[%s283 + $0xe0] sm:$0xf]
        %v504 = vld [vmem:[%s283 + $0xe4] sm:$0xf]
        %v505 = vld [vmem:[%s283 + $0xe8] sm:$0xf]
        %v506 = vld [vmem:[%s283 + $0xec] sm:$0xf]
        %v507 = vld [vmem:[%s283 + $0xf0] sm:$0xf]
        %v508 = vld [vmem:[%s283 + $0xf4] sm:$0xf]
        %v509 = vld [vmem:[%s283 + $0xf8] sm:$0xf]
        %v510 = vld [vmem:[%s283 + $0xfc] sm:$0xf]
        %v515 = vunpack.c.l.b16 %v443
        %v516 = vunpack.c.h.b16 %v443
        %v517 = vunpack.c.l.b16 %v444
        %v518 = vunpack.c.h.b16 %v444
        %v519 = vunpack.c.l.b16 %v445
        %v520 = vunpack.c.h.b16 %v445
        %v521 = vunpack.c.l.b16 %v446
        %v522 = vunpack.c.h.b16 %v446
        %v523 = vpack.c.b16 %v519, %v515
        %v524 = vpack.c.b16 %v520, %v516
        %v525 = vpack.c.b16 %v521, %v517
        %v526 = vpack.c.b16 %v522, %v518
        %v595 = vunpack.c.l.b16 %v447
        %v596 = vunpack.c.l.b16 %v448
        %v597 = vunpack.c.l.b16 %v449
        %v598 = vunpack.c.l.b16 %v450
        %v599 = vunpack.c.l.b16 %v451
        %v600 = vunpack.c.l.b16 %v452
        %v601 = vunpack.c.l.b16 %v453
        %v602 = vunpack.c.l.b16 %v454
        %v603 = vunpack.c.l.b16 %v455
        %v604 = vunpack.c.l.b16 %v456
        %v605 = vunpack.c.l.b16 %v457
        %v606 = vunpack.c.l.b16 %v458
        %v607 = vunpack.c.l.b16 %v459
        %v608 = vunpack.c.l.b16 %v460
        %v609 = vunpack.c.l.b16 %v461
        %v610 = vunpack.c.l.b16 %v462
        %v611 = vunpack.c.l.b16 %v463
        %v612 = vunpack.c.l.b16 %v464
        %v613 = vunpack.c.l.b16 %v465
        %v614 = vunpack.c.l.b16 %v466
        %v615 = vunpack.c.l.b16 %v467
        %v616 = vunpack.c.l.b16 %v468
        %v617 = vunpack.c.l.b16 %v469
        %v618 = vunpack.c.l.b16 %v470
        %v619 = vunpack.c.l.b16 %v471
        %v620 = vunpack.c.l.b16 %v472
        %v621 = vunpack.c.l.b16 %v473
        %v622 = vunpack.c.l.b16 %v474
        %v623 = vunpack.c.l.b16 %v475
        %v624 = vunpack.c.l.b16 %v476
        %v625 = vunpack.c.l.b16 %v477
        %v626 = vunpack.c.l.b16 %v478
        %v627 = vunpack.c.l.b16 %v479
        %v628 = vunpack.c.l.b16 %v480
        %v629 = vunpack.c.l.b16 %v481
        %v630 = vunpack.c.l.b16 %v482
        %v631 = vunpack.c.l.b16 %v483
        %v632 = vunpack.c.l.b16 %v484
        %v633 = vunpack.c.l.b16 %v485
        %v634 = vunpack.c.l.b16 %v486
        %v635 = vunpack.c.l.b16 %v487
        %v636 = vunpack.c.l.b16 %v488
        %v637 = vunpack.c.l.b16 %v489
        %v638 = vunpack.c.l.b16 %v490
        %v639 = vunpack.c.l.b16 %v491
        %v640 = vunpack.c.l.b16 %v492
        %v641 = vunpack.c.l.b16 %v493
        %v642 = vunpack.c.l.b16 %v494
        %v643 = vunpack.c.l.b16 %v495
        %v644 = vunpack.c.l.b16 %v496
        %v645 = vunpack.c.l.b16 %v497
        %v646 = vunpack.c.l.b16 %v498
        %v647 = vunpack.c.l.b16 %v499
        %v648 = vunpack.c.l.b16 %v500
        %v649 = vunpack.c.l.b16 %v501
        %v650 = vunpack.c.l.b16 %v502
        %v651 = vunpack.c.l.b16 %v503
        %v652 = vunpack.c.l.b16 %v504
        %v653 = vunpack.c.l.b16 %v505
        %v654 = vunpack.c.l.b16 %v506
        %v655 = vunpack.c.l.b16 %v507
        %v656 = vunpack.c.l.b16 %v508
        %v657 = vunpack.c.l.b16 %v509
        %v658 = vunpack.c.l.b16 %v510
        %v659 = vpack.c.b16 %v596, %v595
        %v660 = vpack.c.b16 %v598, %v597
        %v661 = vpack.c.b16 %v600, %v599
        %v662 = vpack.c.b16 %v602, %v601
        %v663 = vpack.c.b16 %v604, %v603
        %v664 = vpack.c.b16 %v606, %v605
        %v665 = vpack.c.b16 %v608, %v607
        %v666 = vpack.c.b16 %v610, %v609
        %v667 = vpack.c.b16 %v612, %v611
        %v668 = vpack.c.b16 %v614, %v613
        %v669 = vpack.c.b16 %v616, %v615
        %v670 = vpack.c.b16 %v618, %v617
        %v671 = vpack.c.b16 %v620, %v619
        %v672 = vpack.c.b16 %v622, %v621
        %v673 = vpack.c.b16 %v624, %v623
        %v674 = vpack.c.b16 %v626, %v625
        %v675 = vpack.c.b16 %v628, %v627
        %v676 = vpack.c.b16 %v630, %v629
        %v677 = vpack.c.b16 %v632, %v631
        %v678 = vpack.c.b16 %v634, %v633
        %v679 = vpack.c.b16 %v636, %v635
        %v680 = vpack.c.b16 %v638, %v637
        %v681 = vpack.c.b16 %v640, %v639
        %v682 = vpack.c.b16 %v642, %v641
        %v683 = vpack.c.b16 %v644, %v643
        %v684 = vpack.c.b16 %v646, %v645
        %v685 = vpack.c.b16 %v648, %v647
        %v686 = vpack.c.b16 %v650, %v649
        %v687 = vpack.c.b16 %v652, %v651
        %v688 = vpack.c.b16 %v654, %v653
        %v689 = vpack.c.b16 %v656, %v655
        %v690 = vpack.c.b16 %v658, %v657
        %723 = vmatprep.subr.bf16.mxu0 0
        %724 = vmatpush1.bf16.msra.mxu0 %v659
        %725 = vmatprep.subr.bf16.mxu0 0
        %726 = vmatpush1.bf16.msra.mxu0 %v660
        %727 = vmatprep.subr.bf16.mxu0 0
        %728 = vmatpush1.bf16.msra.mxu0 %v661
        %729 = vmatprep.subr.bf16.mxu0 0
        %730 = vmatpush1.bf16.msra.mxu0 %v662
        %731 = vmatprep.subr.bf16.mxu0 0
        %732 = vmatpush1.bf16.msra.mxu0 %v663
        %733 = vmatprep.subr.bf16.mxu0 0
        %734 = vmatpush1.bf16.msra.mxu0 %v664
        %735 = vmatprep.subr.bf16.mxu0 0
        %736 = vmatpush1.bf16.msra.mxu0 %v665
        %737 = vmatprep.subr.bf16.mxu0 0
        %738 = vmatpush1.bf16.msra.mxu0 %v666
        %739 = vmatprep.subr.bf16.mxu0 0
        %740 = vmatpush1.bf16.msra.mxu0 %v667
        %741 = vmatprep.subr.bf16.mxu0 0
        %742 = vmatpush1.bf16.msra.mxu0 %v668
        %743 = vmatprep.subr.bf16.mxu0 0
        %744 = vmatpush1.bf16.msra.mxu0 %v669
        %745 = vmatprep.subr.bf16.mxu0 0
        %746 = vmatpush1.bf16.msra.mxu0 %v670
        %747 = vmatprep.subr.bf16.mxu0 0
        %748 = vmatpush1.bf16.msra.mxu0 %v671
        %749 = vmatprep.subr.bf16.mxu0 0
        %750 = vmatpush1.bf16.msra.mxu0 %v672
        %751 = vmatprep.subr.bf16.mxu0 0
        %752 = vmatpush1.bf16.msra.mxu0 %v673
        %753 = vmatprep.subr.bf16.mxu0 0
        %754 = vmatpush1.bf16.msra.mxu0 %v674
        %755 = vmatprep.mubr.bf16.mxu0 %v524
        %756 = vmatmul.mubr.bf16.gmra.mrb[0].mxu0 %v523
        %v757 = vpop.f32.mrb[0].mxu0
        %v758 = vadd.f32 0.0, %v757
        %v759 = vpop.f32.mrb[0].mxu0
        %v760 = vpop.f32.mrb[0].mxu0
        %v761 = vadd.f32 0.0, %v760
        %v762 = vpop.f32.mrb[0].mxu0
        %763 = vdwg.mxu0
        %764 = vmatprep.subr.bf16.mxu0 0
        %765 = vmatpush1.bf16.msra.mxu0 %v675
        %766 = vmatprep.subr.bf16.mxu0 0
        %767 = vmatpush1.bf16.msra.mxu0 %v676
        %768 = vmatprep.subr.bf16.mxu0 0
        %769 = vmatpush1.bf16.msra.mxu0 %v677
        %770 = vmatprep.subr.bf16.mxu0 0
        %771 = vmatpush1.bf16.msra.mxu0 %v678
        %772 = vmatprep.subr.bf16.mxu0 0
        %773 = vmatpush1.bf16.msra.mxu0 %v679
        %774 = vmatprep.subr.bf16.mxu0 0
        %775 = vmatpush1.bf16.msra.mxu0 %v680
        %776 = vmatprep.subr.bf16.mxu0 0
        %777 = vmatpush1.bf16.msra.mxu0 %v681
        %778 = vmatprep.subr.bf16.mxu0 0
        %779 = vmatpush1.bf16.msra.mxu0 %v682
        %780 = vmatprep.subr.bf16.mxu0 0
        %781 = vmatpush1.bf16.msra.mxu0 %v683
        %782 = vmatprep.subr.bf16.mxu0 0
        %783 = vmatpush1.bf16.msra.mxu0 %v684
        %784 = vmatprep.subr.bf16.mxu0 0
        %785 = vmatpush1.bf16.msra.mxu0 %v685
        %786 = vmatprep.subr.bf16.mxu0 0
        %787 = vmatpush1.bf16.msra.mxu0 %v686
        %788 = vmatprep.subr.bf16.mxu0 0
        %789 = vmatpush1.bf16.msra.mxu0 %v687
        %790 = vmatprep.subr.bf16.mxu0 0
        %791 = vmatpush1.bf16.msra.mxu0 %v688
        %792 = vmatprep.subr.bf16.mxu0 0
        %793 = vmatpush1.bf16.msra.mxu0 %v689
        %794 = vmatprep.subr.bf16.mxu0 0
        %795 = vmatpush1.bf16.msra.mxu0 %v690
        %796 = vmatprep.mubr.bf16.mxu0 %v526
        %797 = vmatmul.mubr.bf16.gmra.mrb[0].mxu0 %v525
        %v798 = vpop.f32.mrb[0].mxu0
        %v799 = vadd.f32 %v758, %v798
        %v800 = vpop.f32.mrb[0].mxu0
        %v801 = vpop.f32.mrb[0].mxu0
        %v802 = vadd.f32 %v761, %v801
        %v803 = vpop.f32.mrb[0].mxu0
        %804 = vdwg.mxu0
        %v805 = vadd.f32 %v441, %v799
        %v806 = vadd.f32 %v442, %v802
        %807 = vst [vmem:[#allocation2] sm:$0xff] %v805
        %808 = vst [vmem:[#allocation2 + $0x8] sm:$0xff] %v806
        %p809 = scmp.eq.s32.totalorder %s24, 5
        // Predicated region
        $region72: #{worldmodel_forward_seq.3} parent=58 // pred_check
          %p810 = pneg %p809
        $region73: #{worldmodel_forward_seq.3} parent=58 // pred_check_branch
          %812 = sbr.rel (%p810) target = $region75
        $region74: #{worldmodel_forward_seq.3} parent=58 // pred_region
          %v813 = vld [vmem:[#allocation2] sm:$0xff]
          %v814 = vld [vmem:[#allocation2 + $0x8] sm:$0xff]
          %815 = vst [vmem:[%s332] sm:$0xff] %v813
          %816 = vst [vmem:[%s332 + $0x8] sm:$0xff] %v814
        $region75: #{worldmodel_forward_seq.3} parent=58 // pred_fallthru
          _
        %s817 = smul.u32 2, %s23
        %p818 = scmp.lt.s32.totalorder %s817, 1
        %s819 = scalar_select %p818, %s817, 1
        %s820 = smul.addr %s819, 8
        %s821 = scalar_lea.vmem %s5, %s820
        // Predicated region
        $region76: #{worldmodel_forward_seq.3} parent=58 // pred_check
          %p822 = pneg %p171
        $region77: #{worldmodel_forward_seq.3} parent=58 // pred_check_branch
          %824 = sbr.rel (%p822) target = $region79
        $region78: #{worldmodel_forward_seq.3} parent=58 // pred_region
          %s825 = smul.u32 2, %s23
        $region79: #{worldmodel_forward_seq.3} parent=58 // pred_fallthru
          _
        // Predicated region
        $region80: #{worldmodel_forward_seq.3} parent=58 // pred_check
          %p826 = pneg %p171
        $region81: #{worldmodel_forward_seq.3} parent=58 // pred_check_branch
          %828 = sbr.rel (%p826) target = $region83
        $region82: #{worldmodel_forward_seq.3} parent=58 // pred_region
          %s829 = smul.u32 2, %s23
          %p830 = scmp.lt.s32.totalorder %s829, 1
          %s831 = scalar_select %p830, %s829, 1
          %s832 = smul.addr %s831, 8
          %s833 = scalar_lea.vmem %s5, %s832
        $region83: #{worldmodel_forward_seq.3} parent=58 // pred_fallthru
          _
      $region59: #{worldmodel_forward_seq.3} parent=5 // pred_fallthru
        _
      %p834 = scmp.le.s32.totalorder 2, %s14
      // Predicated region
      $region84: #{worldmodel_forward_seq.3} parent=5 // pred_check
        %p835 = pneg %p834
      $region85: #{worldmodel_forward_seq.3} parent=5 // pred_check_branch
        %837 = sbr.rel (%p835) target = $region87
      $region86: #{worldmodel_forward_seq.3} parent=5 // pred_region
        %s838 = ssub.s32 %s14, 2
      $region87: #{worldmodel_forward_seq.3} parent=5 // pred_fallthru
        _
    $region6: #{worldmodel_forward_seq.3} parent=1 // loop_footer
      %s18 = sadd.s32 1, %s14
    $region7: #{worldmodel_forward_seq.3} parent=1 // loop_footer_branch
      %13 = sbr.rel target = $region3
    $region8: #{worldmodel_forward_seq.3} parent=1 // loop_exit
      _
    %839 = vsyncpa [#allocation5], 1
    %s840 = scalar_lea.sflag [#allocation5], 1
    %841 = vsyncpa %s840, 1

// kernel: worldmodel_forward_seq.5
$region0: #{worldmodel_forward_seq.5}
  #allocation0 [shape = 'u32[]', space=smem, size = 0x4, offset = 0x4, fixed_abs, tag = 'smem constant byte address 0x4 - core index']
  #allocation1 [shape = 'u32[144,128]{1,0:T(1,128)}', space=vmem, size = 0x12000, scoped, tag = 'internal scratch']
  %s0 = inlined_call_operand.vmem [shape: f32[16,32], index: 0, kind: input, shape index: {}]
  %s1 = inlined_call_operand.vmem [shape: bf16[32,3072], index: 1, kind: input, shape index: {}]
  %s2 = inlined_call_operand.vmem [shape: f32[1,3072], index: 2, kind: input, shape index: {}]
  %s3 = inlined_call_operand.vmem [shape: f32[16,3072], index: 3, kind: output, shape index: {}]
  %s4 = sld [smem:[#allocation0]]
  $region22: #{worldmodel_forward_seq.5} parent=0
    _
  %s6 = ssub.s32 1, %s4
  %s7 = scalar_select 0, %s6, %s4
  // Predicated region
  $region2: #{worldmodel_forward_seq.5} parent=0 // pred_check
    _
  $region3: #{worldmodel_forward_seq.5} parent=0 // pred_check_branch
    %9 = sbr.rel (0) target = $region5
  $region4: #{worldmodel_forward_seq.5} parent=0 // pred_region
    _
  $region5: #{worldmodel_forward_seq.5} parent=0 // pred_fallthru
    _
  // Predicated region
  $region6: #{worldmodel_forward_seq.5} parent=0 // pred_check
    _
  $region7: #{worldmodel_forward_seq.5} parent=0 // pred_check_branch
    %11 = sbr.rel (0) target = $region9
  $region8: #{worldmodel_forward_seq.5} parent=0 // pred_region
    _
  $region9: #{worldmodel_forward_seq.5} parent=0 // pred_fallthru
    _
  // Predicated region
  $region10: #{worldmodel_forward_seq.5} parent=0 // pred_check
    _
  $region11: #{worldmodel_forward_seq.5} parent=0 // pred_check_branch
    %13 = sbr.rel (0) target = $region13
  $region12: #{worldmodel_forward_seq.5} parent=0 // pred_region
    _
  $region13: #{worldmodel_forward_seq.5} parent=0 // pred_fallthru
    _
  %v15 = vld [vmem:[%s0] sm:$0xff]
  %v16 = vld [vmem:[%s0 + $0x8] sm:$0xff]
  %v17 = vpack.c.bf16 %v16, %v15
  %v18 = vld [vmem:[%s1] sm:$0xff]
  %v19 = vld [vmem:[%s1 + $0x8] sm:$0xff]
  %v20 = vld [vmem:[%s1 + $0x10] sm:$0xff]
  %v21 = vld [vmem:[%s1 + $0x18] sm:$0xff]
  %v22 = vld [vmem:[%s1 + $0x20] sm:$0xff]
  %v23 = vld [vmem:[%s1 + $0x28] sm:$0xff]
  %v24 = vld [vmem:[%s1 + $0x30] sm:$0xff]
  %v25 = vld [vmem:[%s1 + $0x38] sm:$0xff]
  %v26 = vld [vmem:[%s1 + $0x40] sm:$0xff]
  %v27 = vld [vmem:[%s1 + $0x48] sm:$0xff]
  %v28 = vld [vmem:[%s1 + $0x50] sm:$0xff]
  %v29 = vld [vmem:[%s1 + $0x58] sm:$0xff]
  %v30 = vld [vmem:[%s1 + $0x60] sm:$0xff]
  %v31 = vld [vmem:[%s1 + $0x68] sm:$0xff]
  %v32 = vld [vmem:[%s1 + $0x70] sm:$0xff]
  %v33 = vld [vmem:[%s1 + $0x78] sm:$0xff]
  %v34 = vld [vmem:[%s1 + $0x80] sm:$0xff]
  %v35 = vld [vmem:[%s1 + $0x88] sm:$0xff]
  %v36 = vld [vmem:[%s1 + $0x90] sm:$0xff]
  %v37 = vld [vmem:[%s1 + $0x98] sm:$0xff]
  %v38 = vld [vmem:[%s1 + $0xa0] sm:$0xff]
  %v39 = vld [vmem:[%s1 + $0xa8] sm:$0xff]
  %v40 = vld [vmem:[%s1 + $0xb0] sm:$0xff]
  %v41 = vld [vmem:[%s1 + $0xb8] sm:$0xff]
  %v42 = vld [vmem:[%s1 + $0xc0] sm:$0xff]
  %v43 = vld [vmem:[%s1 + $0xc8] sm:$0xff]
  %v44 = vld [vmem:[%s1 + $0xd0] sm:$0xff]
  %v45 = vld [vmem:[%s1 + $0xd8] sm:$0xff]
  %v46 = vld [vmem:[%s1 + $0xe0] sm:$0xff]
  %v47 = vld [vmem:[%s1 + $0xe8] sm:$0xff]
  %v48 = vld [vmem:[%s1 + $0xf0] sm:$0xff]
  %v49 = vld [vmem:[%s1 + $0xf8] sm:$0xff]
  %v50 = vld [vmem:[%s1 + $0x100] sm:$0xff]
  %v51 = vld [vmem:[%s1 + $0x108] sm:$0xff]
  %v52 = vld [vmem:[%s1 + $0x110] sm:$0xff]
  %v53 = vld [vmem:[%s1 + $0x118] sm:$0xff]
  %v54 = vld [vmem:[%s1 + $0x120] sm:$0xff]
  %v55 = vld [vmem:[%s1 + $0x128] sm:$0xff]
  %v56 = vld [vmem:[%s1 + $0x130] sm:$0xff]
  %v57 = vld [vmem:[%s1 + $0x138] sm:$0xff]
  %v58 = vld [vmem:[%s1 + $0x140] sm:$0xff]
  %v59 = vld [vmem:[%s1 + $0x148] sm:$0xff]
  %v60 = vld [vmem:[%s1 + $0x150] sm:$0xff]
  %v61 = vld [vmem:[%s1 + $0x158] sm:$0xff]
  %v62 = vld [vmem:[%s1 + $0x160] sm:$0xff]
  %v63 = vld [vmem:[%s1 + $0x168] sm:$0xff]
  %v64 = vld [vmem:[%s1 + $0x170] sm:$0xff]
  %v65 = vld [vmem:[%s1 + $0x178] sm:$0xff]
  %v66 = vld [vmem:[%s2] sm:$0xff]
  %v67 = vld [vmem:[%s2 + $0x8] sm:$0xff]
  %v68 = vld [vmem:[%s2 + $0x10] sm:$0xff]
  %v72 = vlaneseq
  %v73 = vshrl.u32 %v72, 7
  %v74 = vsub.s32 0, %v73
  %v75 = vrot.slane %v66, %v74
  %v76 = vlaneseq
  %v77 = vshrl.u32 %v76, 7
  %v78 = vsub.s32 1, %v77
  %v79 = vrot.slane %v66, %v78
  %v80 = vlaneseq
  %v81 = vshrl.u32 %v80, 7
  %v82 = vsub.s32 2, %v81
  %v83 = vrot.slane %v66, %v82
  %v84 = vlaneseq
  %v85 = vshrl.u32 %v84, 7
  %v86 = vsub.s32 3, %v85
  %v87 = vrot.slane %v66, %v86
  %v88 = vlaneseq
  %v89 = vshrl.u32 %v88, 7
  %v90 = vsub.s32 4, %v89
  %v91 = vrot.slane %v66, %v90
  %v92 = vlaneseq
  %v93 = vshrl.u32 %v92, 7
  %v94 = vsub.s32 5, %v93
  %v95 = vrot.slane %v66, %v94
  %v96 = vlaneseq
  %v97 = vshrl.u32 %v96, 7
  %v98 = vsub.s32 6, %v97
  %v99 = vrot.slane %v66, %v98
  %v100 = vlaneseq
  %v101 = vshrl.u32 %v100, 7
  %v102 = vsub.s32 7, %v101
  %v103 = vrot.slane %v66, %v102
  %v104 = vlaneseq
  %v105 = vshrl.u32 %v104, 7
  %v106 = vsub.s32 0, %v105
  %v107 = vrot.slane %v67, %v106
  %v108 = vlaneseq
  %v109 = vshrl.u32 %v108, 7
  %v110 = vsub.s32 1, %v109
  %v111 = vrot.slane %v67, %v110
  %v112 = vlaneseq
  %v113 = vshrl.u32 %v112, 7
  %v114 = vsub.s32 2, %v113
  %v115 = vrot.slane %v67, %v114
  %v116 = vlaneseq
  %v117 = vshrl.u32 %v116, 7
  %v118 = vsub.s32 3, %v117
  %v119 = vrot.slane %v67, %v118
  %v120 = vlaneseq
  %v121 = vshrl.u32 %v120, 7
  %v122 = vsub.s32 4, %v121
  %v123 = vrot.slane %v67, %v122
  %v124 = vlaneseq
  %v125 = vshrl.u32 %v124, 7
  %v126 = vsub.s32 5, %v125
  %v127 = vrot.slane %v67, %v126
  %v128 = vlaneseq
  %v129 = vshrl.u32 %v128, 7
  %v130 = vsub.s32 6, %v129
  %v131 = vrot.slane %v67, %v130
  %v132 = vlaneseq
  %v133 = vshrl.u32 %v132, 7
  %v134 = vsub.s32 7, %v133
  %v135 = vrot.slane %v67, %v134
  %v136 = vlaneseq
  %v137 = vshrl.u32 %v136, 7
  %v138 = vsub.s32 0, %v137
  %v139 = vrot.slane %v68, %v138
  %v140 = vlaneseq
  %v141 = vshrl.u32 %v140, 7
  %v142 = vsub.s32 1, %v141
  %v143 = vrot.slane %v68, %v142
  %v144 = vlaneseq
  %v145 = vshrl.u32 %v144, 7
  %v146 = vsub.s32 2, %v145
  %v147 = vrot.slane %v68, %v146
  %v148 = vlaneseq
  %v149 = vshrl.u32 %v148, 7
  %v150 = vsub.s32 3, %v149
  %v151 = vrot.slane %v68, %v150
  %v152 = vlaneseq
  %v153 = vshrl.u32 %v152, 7
  %v154 = vsub.s32 4, %v153
  %v155 = vrot.slane %v68, %v154
  %v156 = vlaneseq
  %v157 = vshrl.u32 %v156, 7
  %v158 = vsub.s32 5, %v157
  %v159 = vrot.slane %v68, %v158
  %v160 = vlaneseq
  %v161 = vshrl.u32 %v160, 7
  %v162 = vsub.s32 6, %v161
  %v163 = vrot.slane %v68, %v162
  %v164 = vlaneseq
  %v165 = vshrl.u32 %v164, 7
  %v166 = vsub.s32 7, %v165
  %v167 = vrot.slane %v68, %v166
  %v240 = vunpack.c.l.b16 %v18
  %v241 = vunpack.c.h.b16 %v18
  %v242 = vunpack.c.l.b16 %v19
  %v243 = vunpack.c.h.b16 %v19
  %v244 = vunpack.c.l.b16 %v20
  %v245 = vunpack.c.h.b16 %v20
  %v246 = vunpack.c.l.b16 %v21
  %v247 = vunpack.c.h.b16 %v21
  %v248 = vunpack.c.l.b16 %v22
  %v249 = vunpack.c.h.b16 %v22
  %v250 = vunpack.c.l.b16 %v23
  %v251 = vunpack.c.h.b16 %v23
  %v252 = vunpack.c.l.b16 %v24
  %v253 = vunpack.c.h.b16 %v24
  %v254 = vunpack.c.l.b16 %v25
  %v255 = vunpack.c.h.b16 %v25
  %v256 = vunpack.c.l.b16 %v26
  %v257 = vunpack.c.h.b16 %v26
  %v258 = vunpack.c.l.b16 %v27
  %v259 = vunpack.c.h.b16 %v27
  %v260 = vunpack.c.l.b16 %v28
  %v261 = vunpack.c.h.b16 %v28
  %v262 = vunpack.c.l.b16 %v29
  %v263 = vunpack.c.h.b16 %v29
  %v264 = vunpack.c.l.b16 %v30
  %v265 = vunpack.c.h.b16 %v30
  %v266 = vunpack.c.l.b16 %v31
  %v267 = vunpack.c.h.b16 %v31
  %v268 = vunpack.c.l.b16 %v32
  %v269 = vunpack.c.h.b16 %v32
  %v270 = vunpack.c.l.b16 %v33
  %v271 = vunpack.c.h.b16 %v33
  %v272 = vunpack.c.l.b16 %v34
  %v273 = vunpack.c.h.b16 %v34
  %v274 = vunpack.c.l.b16 %v35
  %v275 = vunpack.c.h.b16 %v35
  %v276 = vunpack.c.l.b16 %v36
  %v277 = vunpack.c.h.b16 %v36
  %v278 = vunpack.c.l.b16 %v37
  %v279 = vunpack.c.h.b16 %v37
  %v280 = vunpack.c.l.b16 %v38
  %v281 = vunpack.c.h.b16 %v38
  %v282 = vunpack.c.l.b16 %v39
  %v283 = vunpack.c.h.b16 %v39
  %v284 = vunpack.c.l.b16 %v40
  %v285 = vunpack.c.h.b16 %v40
  %v286 = vunpack.c.l.b16 %v41
  %v287 = vunpack.c.h.b16 %v41
  %v288 = vunpack.c.l.b16 %v42
  %v289 = vunpack.c.h.b16 %v42
  %v290 = vunpack.c.l.b16 %v43
  %v291 = vunpack.c.h.b16 %v43
  %v292 = vunpack.c.l.b16 %v44
  %v293 = vunpack.c.h.b16 %v44
  %v294 = vunpack.c.l.b16 %v45
  %v295 = vunpack.c.h.b16 %v45
  %v296 = vunpack.c.l.b16 %v46
  %v297 = vunpack.c.h.b16 %v46
  %v298 = vunpack.c.l.b16 %v47
  %v299 = vunpack.c.h.b16 %v47
  %v300 = vunpack.c.l.b16 %v48
  %v301 = vunpack.c.h.b16 %v48
  %v302 = vunpack.c.l.b16 %v49
  %v303 = vunpack.c.h.b16 %v49
  %v304 = vunpack.c.l.b16 %v50
  %v305 = vunpack.c.h.b16 %v50
  %v306 = vunpack.c.l.b16 %v51
  %v307 = vunpack.c.h.b16 %v51
  %v308 = vunpack.c.l.b16 %v52
  %v309 = vunpack.c.h.b16 %v52
  %v310 = vunpack.c.l.b16 %v53
  %v311 = vunpack.c.h.b16 %v53
  %v312 = vunpack.c.l.b16 %v54
  %v313 = vunpack.c.h.b16 %v54
  %v314 = vunpack.c.l.b16 %v55
  %v315 = vunpack.c.h.b16 %v55
  %v316 = vunpack.c.l.b16 %v56
  %v317 = vunpack.c.h.b16 %v56
  %v318 = vunpack.c.l.b16 %v57
  %v319 = vunpack.c.h.b16 %v57
  %v320 = vunpack.c.l.b16 %v58
  %v321 = vunpack.c.h.b16 %v58
  %v322 = vunpack.c.l.b16 %v59
  %v323 = vunpack.c.h.b16 %v59
  %v324 = vunpack.c.l.b16 %v60
  %v325 = vunpack.c.h.b16 %v60
  %v326 = vunpack.c.l.b16 %v61
  %v327 = vunpack.c.h.b16 %v61
  %v328 = vunpack.c.l.b16 %v62
  %v329 = vunpack.c.h.b16 %v62
  %v330 = vunpack.c.l.b16 %v63
  %v331 = vunpack.c.h.b16 %v63
  %v332 = vunpack.c.l.b16 %v64
  %v333 = vunpack.c.h.b16 %v64
  %v334 = vunpack.c.l.b16 %v65
  %v335 = vunpack.c.h.b16 %v65
  %v336 = vpack.c.b16 %v264, %v240
  %v337 = vpack.c.b16 %v265, %v241
  %v338 = vpack.c.b16 %v266, %v242
  %v339 = vpack.c.b16 %v267, %v243
  %v340 = vpack.c.b16 %v268, %v244
  %v341 = vpack.c.b16 %v269, %v245
  %v342 = vpack.c.b16 %v270, %v246
  %v343 = vpack.c.b16 %v271, %v247
  %v344 = vpack.c.b16 %v272, %v248
  %v345 = vpack.c.b16 %v273, %v249
  %v346 = vpack.c.b16 %v274, %v250
  %v347 = vpack.c.b16 %v275, %v251
  %v348 = vpack.c.b16 %v276, %v252
  %v349 = vpack.c.b16 %v277, %v253
  %v350 = vpack.c.b16 %v278, %v254
  %v351 = vpack.c.b16 %v279, %v255
  %v352 = vpack.c.b16 %v280, %v256
  %v353 = vpack.c.b16 %v281, %v257
  %v354 = vpack.c.b16 %v282, %v258
  %v355 = vpack.c.b16 %v283, %v259
  %v356 = vpack.c.b16 %v284, %v260
  %v357 = vpack.c.b16 %v285, %v261
  %v358 = vpack.c.b16 %v286, %v262
  %v359 = vpack.c.b16 %v287, %v263
  %v360 = vpack.c.b16 %v312, %v288
  %v361 = vpack.c.b16 %v313, %v289
  %v362 = vpack.c.b16 %v314, %v290
  %v363 = vpack.c.b16 %v315, %v291
  %v364 = vpack.c.b16 %v316, %v292
  %v365 = vpack.c.b16 %v317, %v293
  %v366 = vpack.c.b16 %v318, %v294
  %v367 = vpack.c.b16 %v319, %v295
  %v368 = vpack.c.b16 %v320, %v296
  %v369 = vpack.c.b16 %v321, %v297
  %v370 = vpack.c.b16 %v322, %v298
  %v371 = vpack.c.b16 %v323, %v299
  %v372 = vpack.c.b16 %v324, %v300
  %v373 = vpack.c.b16 %v325, %v301
  %v374 = vpack.c.b16 %v326, %v302
  %v375 = vpack.c.b16 %v327, %v303
  %v376 = vpack.c.b16 %v328, %v304
  %v377 = vpack.c.b16 %v329, %v305
  %v378 = vpack.c.b16 %v330, %v306
  %v379 = vpack.c.b16 %v331, %v307
  %v380 = vpack.c.b16 %v332, %v308
  %v381 = vpack.c.b16 %v333, %v309
  %v382 = vpack.c.b16 %v334, %v310
  %v383 = vpack.c.b16 %v335, %v311
  %vm432 = vcmask 261120
  %v434 = vsel %vm432, %v17, 0
  %436 = vmatprep.subr.bf16.mxu0 %v337
  %437 = vmatpush1.bf16.msra.mxu0 %v336
  %438 = vmatprep.subr.bf16.mxu0 %v361
  %439 = vmatpush1.bf16.msra.mxu0 %v360
  %440 = vmatprep.subr.bf16.mxu0 0
  %441 = vmatpush1.bf16.msra.mxu0 0
  %442 = vmatprep.subr.bf16.mxu0 0
  %443 = vmatpush1.bf16.msra.mxu0 0
  %444 = vmatprep.subr.bf16.mxu0 0
  %445 = vmatpush1.bf16.msra.mxu0 0
  %446 = vmatprep.subr.bf16.mxu0 0
  %447 = vmatpush1.bf16.msra.mxu0 0
  %448 = vmatprep.subr.bf16.mxu0 0
  %449 = vmatpush1.bf16.msra.mxu0 0
  %450 = vmatprep.subr.bf16.mxu0 0
  %451 = vmatpush1.bf16.msra.mxu0 0
  %452 = vmatprep.subr.bf16.mxu0 0
  %453 = vmatpush1.bf16.msra.mxu0 0
  %454 = vmatprep.subr.bf16.mxu0 0
  %455 = vmatpush1.bf16.msra.mxu0 0
  %456 = vmatprep.subr.bf16.mxu0 0
  %457 = vmatpush1.bf16.msra.mxu0 0
  %458 = vmatprep.subr.bf16.mxu0 0
  %459 = vmatpush1.bf16.msra.mxu0 0
  %460 = vmatprep.subr.bf16.mxu0 0
  %461 = vmatpush1.bf16.msra.mxu0 0
  %462 = vmatprep.subr.bf16.mxu0 0
  %463 = vmatpush1.bf16.msra.mxu0 0
  %464 = vmatprep.subr.bf16.mxu0 0
  %465 = vmatpush1.bf16.msra.mxu0 0
  %466 = vmatprep.subr.bf16.mxu0 0
  %467 = vmatpush1.bf16.msra.mxu0 0
  %468 = vmatprep.mubr.bf16.mxu0 0
  %469 = vmatmul.mubr.bf16.gmra.mrb[0].mxu0 %v434
  %v470 = vpop.f32.mrb[0].mxu0
  %v471 = vadd.f32 %v75, %v470
  %v472 = vpop.f32.mrb[0].mxu0
  %v473 = vadd.f32 %v79, %v472
  %v474 = vpop.f32.mrb[0].mxu0
  %v475 = vadd.f32 %v75, %v474
  %v476 = vpop.f32.mrb[0].mxu0
  %v477 = vadd.f32 %v79, %v476
  %478 = vdwg.mxu0
  %479 = vmatprep.subr.bf16.mxu0 %v339
  %480 = vmatpush1.bf16.msra.mxu0 %v338
  %481 = vmatprep.subr.bf16.mxu0 %v363
  %482 = vmatpush1.bf16.msra.mxu0 %v362
  %483 = vmatprep.subr.bf16.mxu0 0
  %484 = vmatpush1.bf16.msra.mxu0 0
  %485 = vmatprep.subr.bf16.mxu0 0
  %486 = vmatpush1.bf16.msra.mxu0 0
  %487 = vmatprep.subr.bf16.mxu0 0
  %488 = vmatpush1.bf16.msra.mxu0 0
  %489 = vmatprep.subr.bf16.mxu0 0
  %490 = vmatpush1.bf16.msra.mxu0 0
  %491 = vmatprep.subr.bf16.mxu0 0
  %492 = vmatpush1.bf16.msra.mxu0 0
  %493 = vmatprep.subr.bf16.mxu0 0
  %494 = vmatpush1.bf16.msra.mxu0 0
  %495 = vmatprep.subr.bf16.mxu0 0
  %496 = vmatpush1.bf16.msra.mxu0 0
  %497 = vmatprep.subr.bf16.mxu0 0
  %498 = vmatpush1.bf16.msra.mxu0 0
  %499 = vmatprep.subr.bf16.mxu0 0
  %500 = vmatpush1.bf16.msra.mxu0 0
  %501 = vmatprep.subr.bf16.mxu0 0
  %502 = vmatpush1.bf16.msra.mxu0 0
  %503 = vmatprep.subr.bf16.mxu0 0
  %504 = vmatpush1.bf16.msra.mxu0 0
  %505 = vmatprep.subr.bf16.mxu0 0
  %506 = vmatpush1.bf16.msra.mxu0 0
  %507 = vmatprep.subr.bf16.mxu0 0
  %508 = vmatpush1.bf16.msra.mxu0 0
  %509 = vmatprep.subr.bf16.mxu0 0
  %510 = vmatpush1.bf16.msra.mxu0 0
  %511 = vmatprep.mubr.bf16.mxu0 0
  %512 = vmatmul.mubr.bf16.gmra.mrb[0].mxu0 %v434
  %v513 = vpop.f32.mrb[0].mxu0
  %v514 = vadd.f32 %v83, %v513
  %v515 = vpop.f32.mrb[0].mxu0
  %v516 = vadd.f32 %v87, %v515
  %v517 = vpop.f32.mrb[0].mxu0
  %v518 = vadd.f32 %v83, %v517
  %v519 = vpop.f32.mrb[0].mxu0
  %v520 = vadd.f32 %v87, %v519
  %521 = vdwg.mxu0
  %522 = vmatprep.subr.bf16.mxu0 %v341
  %523 = vmatpush1.bf16.msra.mxu0 %v340
  %524 = vmatprep.subr.bf16.mxu0 %v365
  %525 = vmatpush1.bf16.msra.mxu0 %v364
  %526 = vmatprep.subr.bf16.mxu0 0
  %527 = vmatpush1.bf16.msra.mxu0 0
  %528 = vmatprep.subr.bf16.mxu0 0
  %529 = vmatpush1.bf16.msra.mxu0 0
  %530 = vmatprep.subr.bf16.mxu0 0
  %531 = vmatpush1.bf16.msra.mxu0 0
  %532 = vmatprep.subr.bf16.mxu0 0
  %533 = vmatpush1.bf16.msra.mxu0 0
  %534 = vmatprep.subr.bf16.mxu0 0
  %535 = vmatpush1.bf16.msra.mxu0 0
  %536 = vmatprep.subr.bf16.mxu0 0
  %537 = vmatpush1.bf16.msra.mxu0 0
  %538 = vmatprep.subr.bf16.mxu0 0
  %539 = vmatpush1.bf16.msra.mxu0 0
  %540 = vmatprep.subr.bf16.mxu0 0
  %541 = vmatpush1.bf16.msra.mxu0 0
  %542 = vmatprep.subr.bf16.mxu0 0
  %543 = vmatpush1.bf16.msra.mxu0 0
  %544 = vmatprep.subr.bf16.mxu0 0
  %545 = vmatpush1.bf16.msra.mxu0 0
  %546 = vmatprep.subr.bf16.mxu0 0
  %547 = vmatpush1.bf16.msra.mxu0 0
  %548 = vmatprep.subr.bf16.mxu0 0
  %549 = vmatpush1.bf16.msra.mxu0 0
  %550 = vmatprep.subr.bf16.mxu0 0
  %551 = vmatpush1.bf16.msra.mxu0 0
  %552 = vmatprep.subr.bf16.mxu0 0
  %553 = vmatpush1.bf16.msra.mxu0 0
  %554 = vmatprep.mubr.bf16.mxu0 0
  %555 = vmatmul.mubr.bf16.gmra.mrb[0].mxu0 %v434
  %v556 = vpop.f32.mrb[0].mxu0
  %v557 = vadd.f32 %v91, %v556
  %v558 = vpop.f32.mrb[0].mxu0
  %v559 = vadd.f32 %v95, %v558
  %v560 = vpop.f32.mrb[0].mxu0
  %v561 = vadd.f32 %v91, %v560
  %v562 = vpop.f32.mrb[0].mxu0
  %v563 = vadd.f32 %v95, %v562
  %564 = vdwg.mxu0
  %565 = vmatprep.subr.bf16.mxu0 %v343
  %566 = vmatpush1.bf16.msra.mxu0 %v342
  %567 = vmatprep.subr.bf16.mxu0 %v367
  %568 = vmatpush1.bf16.msra.mxu0 %v366
  %569 = vmatprep.subr.bf16.mxu0 0
  %570 = vmatpush1.bf16.msra.mxu0 0
  %571 = vmatprep.subr.bf16.mxu0 0
  %572 = vmatpush1.bf16.msra.mxu0 0
  %573 = vmatprep.subr.bf16.mxu0 0
  %574 = vmatpush1.bf16.msra.mxu0 0
  %575 = vmatprep.subr.bf16.mxu0 0
  %576 = vmatpush1.bf16.msra.mxu0 0
  %577 = vmatprep.subr.bf16.mxu0 0
  %578 = vmatpush1.bf16.msra.mxu0 0
  %579 = vmatprep.subr.bf16.mxu0 0
  %580 = vmatpush1.bf16.msra.mxu0 0
  %581 = vmatprep.subr.bf16.mxu0 0
  %582 = vmatpush1.bf16.msra.mxu0 0
  %583 = vmatprep.subr.bf16.mxu0 0
  %584 = vmatpush1.bf16.msra.mxu0 0
  %585 = vmatprep.subr.bf16.mxu0 0
  %586 = vmatpush1.bf16.msra.mxu0 0
  %587 = vmatprep.subr.bf16.mxu0 0
  %588 = vmatpush1.bf16.msra.mxu0 0
  %589 = vmatprep.subr.bf16.mxu0 0
  %590 = vmatpush1.bf16.msra.mxu0 0
  %591 = vmatprep.subr.bf16.mxu0 0
  %592 = vmatpush1.bf16.msra.mxu0 0
  %593 = vmatprep.subr.bf16.mxu0 0
  %594 = vmatpush1.bf16.msra.mxu0 0
  %595 = vmatprep.subr.bf16.mxu0 0
  %596 = vmatpush1.bf16.msra.mxu0 0
  %597 = vmatprep.mubr.bf16.mxu0 0
  %598 = vmatmul.mubr.bf16.gmra.mrb[0].mxu0 %v434
  %v599 = vpop.f32.mrb[0].mxu0
  %v600 = vadd.f32 %v99, %v599
  %v601 = vpop.f32.mrb[0].mxu0
  %v602 = vadd.f32 %v103, %v601
  %v603 = vpop.f32.mrb[0].mxu0
  %v604 = vadd.f32 %v99, %v603
  %v605 = vpop.f32.mrb[0].mxu0
  %v606 = vadd.f32 %v103, %v605
  %607 = vdwg.mxu0
  %608 = vmatprep.subr.bf16.mxu0 %v345
  %609 = vmatpush1.bf16.msra.mxu0 %v344
  %610 = vmatprep.subr.bf16.mxu0 %v369
  %611 = vmatpush1.bf16.msra.mxu0 %v368
  %612 = vmatprep.subr.bf16.mxu0 0
  %613 = vmatpush1.bf16.msra.mxu0 0
  %614 = vmatprep.subr.bf16.mxu0 0
  %615 = vmatpush1.bf16.msra.mxu0 0
  %616 = vmatprep.subr.bf16.mxu0 0
  %617 = vmatpush1.bf16.msra.mxu0 0
  %618 = vmatprep.subr.bf16.mxu0 0
  %619 = vmatpush1.bf16.msra.mxu0 0
  %620 = vmatprep.subr.bf16.mxu0 0
  %621 = vmatpush1.bf16.msra.mxu0 0
  %622 = vmatprep.subr.bf16.mxu0 0
  %623 = vmatpush1.bf16.msra.mxu0 0
  %624 = vmatprep.subr.bf16.mxu0 0
  %625 = vmatpush1.bf16.msra.mxu0 0
  %626 = vmatprep.subr.bf16.mxu0 0
  %627 = vmatpush1.bf16.msra.mxu0 0
  %628 = vmatprep.subr.bf16.mxu0 0
  %629 = vmatpush1.bf16.msra.mxu0 0
  %630 = vmatprep.subr.bf16.mxu0 0
  %631 = vmatpush1.bf16.msra.mxu0 0
  %632 = vmatprep.subr.bf16.mxu0 0
  %633 = vmatpush1.bf16.msra.mxu0 0
  %634 = vmatprep.subr.bf16.mxu0 0
  %635 = vmatpush1.bf16.msra.mxu0 0
  %636 = vmatprep.subr.bf16.mxu0 0
  %637 = vmatpush1.bf16.msra.mxu0 0
  %638 = vmatprep.subr.bf16.mxu0 0
  %639 = vmatpush1.bf16.msra.mxu0 0
  %640 = vmatprep.mubr.bf16.mxu0 0
  %641 = vmatmul.mubr.bf16.gmra.mrb[0].mxu0 %v434
  %v642 = vpop.f32.mrb[0].mxu0
  %v643 = vadd.f32 %v107, %v642
  %v644 = vpop.f32.mrb[0].mxu0
  %v645 = vadd.f32 %v111, %v644
  %v646 = vpop.f32.mrb[0].mxu0
  %v647 = vadd.f32 %v107, %v646
  %v648 = vpop.f32.mrb[0].mxu0
  %v649 = vadd.f32 %v111, %v648
  %650 = vdwg.mxu0
  %651 = vmatprep.subr.bf16.mxu0 %v347
  %652 = vmatpush1.bf16.msra.mxu0 %v346
  %653 = vmatprep.subr.bf16.mxu0 %v371
  %654 = vmatpush1.bf16.msra.mxu0 %v370
  %655 = vmatprep.subr.bf16.mxu0 0
  %656 = vmatpush1.bf16.msra.mxu0 0
  %657 = vmatprep.subr.bf16.mxu0 0
  %658 = vmatpush1.bf16.msra.mxu0 0
  %659 = vmatprep.subr.bf16.mxu0 0
  %660 = vmatpush1.bf16.msra.mxu0 0
  %661 = vmatprep.subr.bf16.mxu0 0
  %662 = vmatpush1.bf16.msra.mxu0 0
  %663 = vmatprep.subr.bf16.mxu0 0
  %664 = vmatpush1.bf16.msra.mxu0 0
  %665 = vmatprep.subr.bf16.mxu0 0
  %666 = vmatpush1.bf16.msra.mxu0 0
  %667 = vmatprep.subr.bf16.mxu0 0
  %668 = vmatpush1.bf16.msra.mxu0 0
  %669 = vmatprep.subr.bf16.mxu0 0
  %670 = vmatpush1.bf16.msra.mxu0 0
  %671 = vmatprep.subr.bf16.mxu0 0
  %672 = vmatpush1.bf16.msra.mxu0 0
  %673 = vmatprep.subr.bf16.mxu0 0
  %674 = vmatpush1.bf16.msra.mxu0 0
  %675 = vmatprep.subr.bf16.mxu0 0
  %676 = vmatpush1.bf16.msra.mxu0 0
  %677 = vmatprep.subr.bf16.mxu0 0
  %678 = vmatpush1.bf16.msra.mxu0 0
  %679 = vmatprep.subr.bf16.mxu0 0
  %680 = vmatpush1.bf16.msra.mxu0 0
  %681 = vmatprep.subr.bf16.mxu0 0
  %682 = vmatpush1.bf16.msra.mxu0 0
  %683 = vmatprep.mubr.bf16.mxu0 0
  %684 = vmatmul.mubr.bf16.gmra.mrb[0].mxu0 %v434
  %v685 = vpop.f32.mrb[0].mxu0
  %v686 = vadd.f32 %v115, %v685
  %v687 = vpop.f32.mrb[0].mxu0
  %v688 = vadd.f32 %v119, %v687
  %v689 = vpop.f32.mrb[0].mxu0
  %v690 = vadd.f32 %v115, %v689
  %v691 = vpop.f32.mrb[0].mxu0
  %v692 = vadd.f32 %v119, %v691
  %693 = vdwg.mxu0
  %694 = vmatprep.subr.bf16.mxu0 %v349
  %695 = vmatpush1.bf16.msra.mxu0 %v348
  %696 = vmatprep.subr.bf16.mxu0 %v373
  %697 = vmatpush1.bf16.msra.mxu0 %v372
  %698 = vmatprep.subr.bf16.mxu0 0
  %699 = vmatpush1.bf16.msra.mxu0 0
  %700 = vmatprep.subr.bf16.mxu0 0
  %701 = vmatpush1.bf16.msra.mxu0 0
  %702 = vmatprep.subr.bf16.mxu0 0
  %703 = vmatpush1.bf16.msra.mxu0 0
  %704 = vmatprep.subr.bf16.mxu0 0
  %705 = vmatpush1.bf16.msra.mxu0 0
  %706 = vmatprep.subr.bf16.mxu0 0
  %707 = vmatpush1.bf16.msra.mxu0 0
  %708 = vmatprep.subr.bf16.mxu0 0
  %709 = vmatpush1.bf16.msra.mxu0 0
  %710 = vmatprep.subr.bf16.mxu0 0
  %711 = vmatpush1.bf16.msra.mxu0 0
  %712 = vmatprep.subr.bf16.mxu0 0
  %713 = vmatpush1.bf16.msra.mxu0 0
  %714 = vmatprep.subr.bf16.mxu0 0
  %715 = vmatpush1.bf16.msra.mxu0 0
  %716 = vmatprep.subr.bf16.mxu0 0
  %717 = vmatpush1.bf16.msra.mxu0 0
  %718 = vmatprep.subr.bf16.mxu0 0
  %719 = vmatpush1.bf16.msra.mxu0 0
  %720 = vmatprep.subr.bf16.mxu0 0
  %721 = vmatpush1.bf16.msra.mxu0 0
  %722 = vmatprep.subr.bf16.mxu0 0
  %723 = vmatpush1.bf16.msra.mxu0 0
  %724 = vmatprep.subr.bf16.mxu0 0
  %725 = vmatpush1.bf16.msra.mxu0 0
  %726 = vmatprep.mubr.bf16.mxu0 0
  %727 = vmatmul.mubr.bf16.gmra.mrb[0].mxu0 %v434
  %v728 = vpop.f32.mrb[0].mxu0
  %v729 = vadd.f32 %v123, %v728
  %v730 = vpop.f32.mrb[0].mxu0
  %v731 = vadd.f32 %v127, %v730
  %v732 = vpop.f32.mrb[0].mxu0
  %v733 = vadd.f32 %v123, %v732
  %v734 = vpop.f32.mrb[0].mxu0
  %v735 = vadd.f32 %v127, %v734
  %736 = vdwg.mxu0
  %737 = vmatprep.subr.bf16.mxu0 %v351
  %738 = vmatpush1.bf16.msra.mxu0 %v350
  %739 = vmatprep.subr.bf16.mxu0 %v375
  %740 = vmatpush1.bf16.msra.mxu0 %v374
  %741 = vmatprep.subr.bf16.mxu0 0
  %742 = vmatpush1.bf16.msra.mxu0 0
  %743 = vmatprep.subr.bf16.mxu0 0
  %744 = vmatpush1.bf16.msra.mxu0 0
  %745 = vmatprep.subr.bf16.mxu0 0
  %746 = vmatpush1.bf16.msra.mxu0 0
  %747 = vmatprep.subr.bf16.mxu0 0
  %748 = vmatpush1.bf16.msra.mxu0 0
  %749 = vmatprep.subr.bf16.mxu0 0
  %750 = vmatpush1.bf16.msra.mxu0 0
  %751 = vmatprep.subr.bf16.mxu0 0
  %752 = vmatpush1.bf16.msra.mxu0 0
  %753 = vmatprep.subr.bf16.mxu0 0
  %754 = vmatpush1.bf16.msra.mxu0 0
  %755 = vmatprep.subr.bf16.mxu0 0
  %756 = vmatpush1.bf16.msra.mxu0 0
  %757 = vmatprep.subr.bf16.mxu0 0
  %758 = vmatpush1.bf16.msra.mxu0 0
  %759 = vmatprep.subr.bf16.mxu0 0
  %760 = vmatpush1.bf16.msra.mxu0 0
  %761 = vmatprep.subr.bf16.mxu0 0
  %762 = vmatpush1.bf16.msra.mxu0 0
  %763 = vmatprep.subr.bf16.mxu0 0
  %764 = vmatpush1.bf16.msra.mxu0 0
  %765 = vmatprep.subr.bf16.mxu0 0
  %766 = vmatpush1.bf16.msra.mxu0 0
  %767 = vmatprep.subr.bf16.mxu0 0
  %768 = vmatpush1.bf16.msra.mxu0 0
  %769 = vmatprep.mubr.bf16.mxu0 0
  %770 = vmatmul.mubr.bf16.gmra.mrb[0].mxu0 %v434
  %v771 = vpop.f32.mrb[0].mxu0
  %v772 = vadd.f32 %v131, %v771
  %v773 = vpop.f32.mrb[0].mxu0
  %v774 = vadd.f32 %v135, %v773
  %v775 = vpop.f32.mrb[0].mxu0
  %v776 = vadd.f32 %v131, %v775
  %v777 = vpop.f32.mrb[0].mxu0
  %v778 = vadd.f32 %v135, %v777
  %779 = vdwg.mxu0
  %780 = vmatprep.subr.bf16.mxu0 %v353
  %781 = vmatpush1.bf16.msra.mxu0 %v352
  %782 = vmatprep.subr.bf16.mxu0 %v377
  %783 = vmatpush1.bf16.msra.mxu0 %v376
  %784 = vmatprep.subr.bf16.mxu0 0
  %785 = vmatpush1.bf16.msra.mxu0 0
  %786 = vmatprep.subr.bf16.mxu0 0
  %787 = vmatpush1.bf16.msra.mxu0 0
  %788 = vmatprep.subr.bf16.mxu0 0
  %789 = vmatpush1.bf16.msra.mxu0 0
  %790 = vmatprep.subr.bf16.mxu0 0
  %791 = vmatpush1.bf16.msra.mxu0 0
  %792 = vmatprep.subr.bf16.mxu0 0
  %793 = vmatpush1.bf16.msra.mxu0 0
  %794 = vmatprep.subr.bf16.mxu0 0
  %795 = vmatpush1.bf16.msra.mxu0 0
  %796 = vmatprep.subr.bf16.mxu0 0
  %797 = vmatpush1.bf16.msra.mxu0 0
  %798 = vmatprep.subr.bf16.mxu0 0
  %799 = vmatpush1.bf16.msra.mxu0 0
  %800 = vmatprep.subr.bf16.mxu0 0
  %801 = vmatpush1.bf16.msra.mxu0 0
  %802 = vmatprep.subr.bf16.mxu0 0
  %803 = vmatpush1.bf16.msra.mxu0 0
  %804 = vmatprep.subr.bf16.mxu0 0
  %805 = vmatpush1.bf16.msra.mxu0 0
  %806 = vmatprep.subr.bf16.mxu0 0
  %807 = vmatpush1.bf16.msra.mxu0 0
  %808 = vmatprep.subr.bf16.mxu0 0
  %809 = vmatpush1.bf16.msra.mxu0 0
  %810 = vmatprep.subr.bf16.mxu0 0
  %811 = vmatpush1.bf16.msra.mxu0 0
  %812 = vmatprep.mubr.bf16.mxu0 0
  %813 = vmatmul.mubr.bf16.gmra.mrb[0].mxu0 %v434
  %v814 = vpop.f32.mrb[0].mxu0
  %v815 = vadd.f32 %v139, %v814
  %v816 = vpop.f32.mrb[0].mxu0
  %v817 = vadd.f32 %v143, %v816
  %v818 = vpop.f32.mrb[0].mxu0
  %v819 = vadd.f32 %v139, %v818
  %v820 = vpop.f32.mrb[0].mxu0
  %v821 = vadd.f32 %v143, %v820
  %822 = vdwg.mxu0
  %823 = vmatprep.subr.bf16.mxu0 %v355
  %824 = vmatpush1.bf16.msra.mxu0 %v354
  %825 = vmatprep.subr.bf16.mxu0 %v379
  %826 = vmatpush1.bf16.msra.mxu0 %v378
  %827 = vmatprep.subr.bf16.mxu0 0
  %828 = vmatpush1.bf16.msra.mxu0 0
  %829 = vmatprep.subr.bf16.mxu0 0
  %830 = vmatpush1.bf16.msra.mxu0 0
  %831 = vmatprep.subr.bf16.mxu0 0
  %832 = vmatpush1.bf16.msra.mxu0 0
  %833 = vmatprep.subr.bf16.mxu0 0
  %834 = vmatpush1.bf16.msra.mxu0 0
  %835 = vmatprep.subr.bf16.mxu0 0
  %836 = vmatpush1.bf16.msra.mxu0 0
  %837 = vmatprep.subr.bf16.mxu0 0
  %838 = vmatpush1.bf16.msra.mxu0 0
  %839 = vmatprep.subr.bf16.mxu0 0
  %840 = vmatpush1.bf16.msra.mxu0 0
  %841 = vmatprep.subr.bf16.mxu0 0
  %842 = vmatpush1.bf16.msra.mxu0 0
  %843 = vmatprep.subr.bf16.mxu0 0
  %844 = vmatpush1.bf16.msra.mxu0 0
  %845 = vmatprep.subr.bf16.mxu0 0
  %846 = vmatpush1.bf16.msra.mxu0 0
  %847 = vmatprep.subr.bf16.mxu0 0
  %848 = vmatpush1.bf16.msra.mxu0 0
  %849 = vmatprep.subr.bf16.mxu0 0
  %850 = vmatpush1.bf16.msra.mxu0 0
  %851 = vmatprep.subr.bf16.mxu0 0
  %852 = vmatpush1.bf16.msra.mxu0 0
  %853 = vmatprep.subr.bf16.mxu0 0
  %854 = vmatpush1.bf16.msra.mxu0 0
  %855 = vmatprep.mubr.bf16.mxu0 0
  %856 = vmatmul.mubr.bf16.gmra.mrb[0].mxu0 %v434
  %v857 = vpop.f32.mrb[0].mxu0
  %v858 = vadd.f32 %v147, %v857
  %v859 = vpop.f32.mrb[0].mxu0
  %v860 = vadd.f32 %v151, %v859
  %v861 = vpop.f32.mrb[0].mxu0
  %v862 = vadd.f32 %v147, %v861
  %v863 = vpop.f32.mrb[0].mxu0
  %v864 = vadd.f32 %v151, %v863
  %865 = vdwg.mxu0
  %866 = vmatprep.subr.bf16.mxu0 %v357
  %867 = vmatpush1.bf16.msra.mxu0 %v356
  %868 = vmatprep.subr.bf16.mxu0 %v381
  %869 = vmatpush1.bf16.msra.mxu0 %v380
  %870 = vmatprep.subr.bf16.mxu0 0
  %871 = vmatpush1.bf16.msra.mxu0 0
  %872 = vmatprep.subr.bf16.mxu0 0
  %873 = vmatpush1.bf16.msra.mxu0 0
  %874 = vmatprep.subr.bf16.mxu0 0
  %875 = vmatpush1.bf16.msra.mxu0 0
  %876 = vmatprep.subr.bf16.mxu0 0
  %877 = vmatpush1.bf16.msra.mxu0 0
  %878 = vmatprep.subr.bf16.mxu0 0
  %879 = vmatpush1.bf16.msra.mxu0 0
  %880 = vmatprep.subr.bf16.mxu0 0
  %881 = vmatpush1.bf16.msra.mxu0 0
  %882 = vmatprep.subr.bf16.mxu0 0
  %883 = vmatpush1.bf16.msra.mxu0 0
  %884 = vmatprep.subr.bf16.mxu0 0
  %885 = vmatpush1.bf16.msra.mxu0 0
  %886 = vmatprep.subr.bf16.mxu0 0
  %887 = vmatpush1.bf16.msra.mxu0 0
  %888 = vmatprep.subr.bf16.mxu0 0
  %889 = vmatpush1.bf16.msra.mxu0 0
  %890 = vmatprep.subr.bf16.mxu0 0
  %891 = vmatpush1.bf16.msra.mxu0 0
  %892 = vmatprep.subr.bf16.mxu0 0
  %893 = vmatpush1.bf16.msra.mxu0 0
  %894 = vmatprep.subr.bf16.mxu0 0
  %895 = vmatpush1.bf16.msra.mxu0 0
  %896 = vmatprep.subr.bf16.mxu0 0
  %897 = vmatpush1.bf16.msra.mxu0 0
  %898 = vmatprep.mubr.bf16.mxu0 0
  %899 = vmatmul.mubr.bf16.gmra.mrb[0].mxu0 %v434
  %v900 = vpop.f32.mrb[0].mxu0
  %v901 = vadd.f32 %v155, %v900
  %v902 = vpop.f32.mrb[0].mxu0
  %v903 = vadd.f32 %v159, %v902
  %v904 = vpop.f32.mrb[0].mxu0
  %v905 = vadd.f32 %v155, %v904
  %v906 = vpop.f32.mrb[0].mxu0
  %v907 = vadd.f32 %v159, %v906
  %908 = vdwg.mxu0
  %909 = vmatprep.subr.bf16.mxu0 %v359
  %910 = vmatpush1.bf16.msra.mxu0 %v358
  %911 = vmatprep.subr.bf16.mxu0 %v383
  %912 = vmatpush1.bf16.msra.mxu0 %v382
  %913 = vmatprep.subr.bf16.mxu0 0
  %914 = vmatpush1.bf16.msra.mxu0 0
  %915 = vmatprep.subr.bf16.mxu0 0
  %916 = vmatpush1.bf16.msra.mxu0 0
  %917 = vmatprep.subr.bf16.mxu0 0
  %918 = vmatpush1.bf16.msra.mxu0 0
  %919 = vmatprep.subr.bf16.mxu0 0
  %920 = vmatpush1.bf16.msra.mxu0 0
  %921 = vmatprep.subr.bf16.mxu0 0
  %922 = vmatpush1.bf16.msra.mxu0 0
  %923 = vmatprep.subr.bf16.mxu0 0
  %924 = vmatpush1.bf16.msra.mxu0 0
  %925 = vmatprep.subr.bf16.mxu0 0
  %926 = vmatpush1.bf16.msra.mxu0 0
  %927 = vmatprep.subr.bf16.mxu0 0
  %928 = vmatpush1.bf16.msra.mxu0 0
  %929 = vmatprep.subr.bf16.mxu0 0
  %930 = vmatpush1.bf16.msra.mxu0 0
  %931 = vmatprep.subr.bf16.mxu0 0
  %932 = vmatpush1.bf16.msra.mxu0 0
  %933 = vmatprep.subr.bf16.mxu0 0
  %934 = vmatpush1.bf16.msra.mxu0 0
  %935 = vmatprep.subr.bf16.mxu0 0
  %936 = vmatpush1.bf16.msra.mxu0 0
  %937 = vmatprep.subr.bf16.mxu0 0
  %938 = vmatpush1.bf16.msra.mxu0 0
  %939 = vmatprep.subr.bf16.mxu0 0
  %940 = vmatpush1.bf16.msra.mxu0 0
  %941 = vmatprep.mubr.bf16.mxu0 0
  %942 = vmatmul.mubr.bf16.gmra.mrb[0].mxu0 %v434
  %v943 = vpop.f32.mrb[0].mxu0
  %v944 = vadd.f32 %v163, %v943
  %v945 = vpop.f32.mrb[0].mxu0
  %v946 = vadd.f32 %v167, %v945
  %v947 = vpop.f32.mrb[0].mxu0
  %v948 = vadd.f32 %v163, %v947
  %v949 = vpop.f32.mrb[0].mxu0
  %v950 = vadd.f32 %v167, %v949
  %951 = vdwg.mxu0
  %952 = vst [vmem:[%s3] sm:$0xff] %v471
  %953 = vst [vmem:[%s3 + $0x8] sm:$0xff] %v473
  %954 = vst [vmem:[%s3 + $0x10] sm:$0xff] %v514
  %955 = vst [vmem:[%s3 + $0x18] sm:$0xff] %v516
  %956 = vst [vmem:[%s3 + $0x20] sm:$0xff] %v557
  %957 = vst [vmem:[%s3 + $0x28] sm:$0xff] %v559
  %958 = vst [vmem:[%s3 + $0x30] sm:$0xff] %v600
  %959 = vst [vmem:[%s3 + $0x38] sm:$0xff] %v602
  %960 = vst [vmem:[%s3 + $0x40] sm:$0xff] %v643
  %961 = vst [vmem:[%s3 + $0x48] sm:$0xff] %v645
  %962 = vst [vmem:[%s3 + $0x50] sm:$0xff] %v686
  %963 = vst [vmem:[%s3 + $0x58] sm:$0xff] %v688
  %964 = vst [vmem:[%s3 + $0x60] sm:$0xff] %v729
  %965 = vst [vmem:[%s3 + $0x68] sm:$0xff] %v731
  %966 = vst [vmem:[%s3 + $0x70] sm:$0xff] %v772
  %967 = vst [vmem:[%s3 + $0x78] sm:$0xff] %v774
  %968 = vst [vmem:[%s3 + $0x80] sm:$0xff] %v815
  %969 = vst [vmem:[%s3 + $0x88] sm:$0xff] %v817
  %970 = vst [vmem:[%s3 + $0x90] sm:$0xff] %v858
  %971 = vst [vmem:[%s3 + $0x98] sm:$0xff] %v860
  %972 = vst [vmem:[%s3 + $0xa0] sm:$0xff] %v901
  %973 = vst [vmem:[%s3 + $0xa8] sm:$0xff] %v903
  %974 = vst [vmem:[%s3 + $0xb0] sm:$0xff] %v944
  %975 = vst [vmem:[%s3 + $0xb8] sm:$0xff] %v946
  %976 = vst [vmem:[%s3 + $0xc0] sm:$0xff] %v475
  %977 = vst [vmem:[%s3 + $0xc8] sm:$0xff] %v477
  %978 = vst [vmem:[%s3 + $0xd0] sm:$0xff] %v518
  %979 = vst [vmem:[%s3 + $0xd8] sm:$0xff] %v520
  %980 = vst [vmem:[%s3 + $0xe0] sm:$0xff] %v561
  %981 = vst [vmem:[%s3 + $0xe8] sm:$0xff] %v563
  %982 = vst [vmem:[%s3 + $0xf0] sm:$0xff] %v604
  %983 = vst [vmem:[%s3 + $0xf8] sm:$0xff] %v606
  %984 = vst [vmem:[%s3 + $0x100] sm:$0xff] %v647
  %985 = vst [vmem:[%s3 + $0x108] sm:$0xff] %v649
  %986 = vst [vmem:[%s3 + $0x110] sm:$0xff] %v690
  %987 = vst [vmem:[%s3 + $0x118] sm:$0xff] %v692
  %988 = vst [vmem:[%s3 + $0x120] sm:$0xff] %v733
  %989 = vst [vmem:[%s3 + $0x128] sm:$0xff] %v735
  %990 = vst [vmem:[%s3 + $0x130] sm:$0xff] %v776
  %991 = vst [vmem:[%s3 + $0x138] sm:$0xff] %v778
  %992 = vst [vmem:[%s3 + $0x140] sm:$0xff] %v819
  %993 = vst [vmem:[%s3 + $0x148] sm:$0xff] %v821
  %994 = vst [vmem:[%s3 + $0x150] sm:$0xff] %v862
  %995 = vst [vmem:[%s3 + $0x158] sm:$0xff] %v864
  %996 = vst [vmem:[%s3 + $0x160] sm:$0xff] %v905
  %997 = vst [vmem:[%s3 + $0x168] sm:$0xff] %v907
  %998 = vst [vmem:[%s3 + $0x170] sm:$0xff] %v948
  %999 = vst [vmem:[%s3 + $0x178] sm:$0xff] %v950
  // Predicated region
  $region14: #{worldmodel_forward_seq.5} parent=0 // pred_check
    _
  $region15: #{worldmodel_forward_seq.5} parent=0 // pred_check_branch
    %1001 = sbr.rel (0) target = $region17
  $region16: #{worldmodel_forward_seq.5} parent=0 // pred_region
    _
  $region17: #{worldmodel_forward_seq.5} parent=0 // pred_fallthru
    _
  // Predicated region
  $region18: #{worldmodel_forward_seq.5} parent=0 // pred_check
    _
  $region19: #{worldmodel_forward_seq.5} parent=0 // pred_check_branch
    %1003 = sbr.rel (0) target = $region21
  $region20: #{worldmodel_forward_seq.5} parent=0 // pred_region
    _
  $region21: #{worldmodel_forward_seq.5} parent=0 // pred_fallthru
    _

</llo_original>
